<compile_context>
chip_gen: v7x
topology: tpu7x:2x2x1
jax: 0.10.0
libtpu: 0.0.40
codegen_flags: <defaults>
</compile_context>

<pallas_src>
import functools
import math

import jax
import jax.numpy as jnp
from jax.experimental import pallas as pl
from jax.experimental.pallas import tpu as pltpu

# ----- synthetic config -----
INPUT_SIZE = 16
HIDDEN_SIZE = 32
NUM_HEADS = 1                     # head_dim == hidden_size (see note above)
INTERMEDIATE_SIZE = 64
NUM_LAYERS = 2
N_CLASSES = 50
PAD_CLASSES = 128                 # lane-dense classifier output, sliced to 50 outside
LN_EPS = 1e-5
HEAD_DIM = HIDDEN_SIZE // NUM_HEADS


# ----- shared math helpers -----
def _layernorm(x, gamma, beta, eps=LN_EPS):
    mu = jnp.mean(x, axis=-1, keepdims=True)
    var = jnp.mean((x - mu) ** 2, axis=-1, keepdims=True)
    return (x - mu) * jax.lax.rsqrt(var + eps) * gamma + beta


def _gelu(x):  # exact (erf) GELU, matching torch.nn.GELU default
    return 0.5 * x * (1.0 + jax.lax.erf(x * (1.0 / math.sqrt(2.0))))


def _softmax_ref(x, axis):  # reference path: exact division
    m = jnp.max(x, axis=axis, keepdims=True)
    e = jnp.exp(x - m)
    return e / jnp.sum(e, axis=axis, keepdims=True)


def _ksoftmax(x, axis):  # kernel path: EUP approximate reciprocal
    m = jnp.max(x, axis=axis, keepdims=True)
    e = jnp.exp(x - m)
    return e * pl.reciprocal(jnp.sum(e, axis=axis, keepdims=True), approx=True)


def _vmem_specs(n):
    return [pl.BlockSpec(memory_space=pltpu.MemorySpace.VMEM) for _ in range(n)]


# ================= fused Pallas kernel =================

def _fused_forward_kernel(B, T, *refs):
    (x_ref, wi_ref, bi_ref, cos_ref, sin_ref, rot_ref, mask_ref,
     poolw_ref, apw_ref, apb_ref,
     plng_ref, plnb_ref, pw1_ref, pb1_ref, pw2_ref, pb2_ref,
     cw_ref, cb_ref) = refs[:18]
    layer_refs = refs[18:-1]       # 8 refs per transformer block
    o_ref = refs[-1]

    f32 = jnp.float32
    scale = 1.0 / math.sqrt(HEAD_DIM)

    # ---- input projection: (B*T, IN) @ (IN, H) + (1, H) ----
    h = jnp.dot(x_ref[...], wi_ref[...], preferred_element_type=f32) + bi_ref[...]

    cos = cos_ref[...]             # (B*T, H)  (RoPE tables pre-tiled over batch)
    sin = sin_ref[...]
    rot_m = rot_ref[...]           # (H, H) signed rotate_half permutation matrix
    mask = mask_ref[...]           # (B*T, B*T) block-diagonal attention mask

    n_layers = len(layer_refs) // 8
    for l in range(n_layers):
        ln1g, ln1b, ln2g, ln2b, w1, b1, w2, b2 = layer_refs[8 * l: 8 * (l + 1)]

        # pre-norm + RoPE (q == k rotated; v keeps the un-rotated normed input)
        hn = _layernorm(h, ln1g[...], ln1b[...])
        q = hn * cos + jnp.dot(hn, rot_m, preferred_element_type=f32) * sin

        # single-head attention over the full hidden dim, all batches at once
        logits = jax.lax.dot_general(
            q, q, (((1,), (1,)), ((), ())), preferred_element_type=f32) * scale + mask
        attn = _ksoftmax(logits, axis=-1)
        h = h + jnp.dot(attn, hn, preferred_element_type=f32)

        # MLP: LN -> Linear(H, I) -> GELU -> Linear(I, H), residual
        hn2 = _layernorm(h, ln2g[...], ln2b[...])
        m = _gelu(jnp.dot(hn2, w1[...], preferred_element_type=f32) + b1[...])
        h = h + jnp.dot(m, w2[...], preferred_element_type=f32) + b2[...]

    # ---- MultiPooling head (per-batch static row slices of the flat slab) ----
    apw = apw_ref[...]             # (1, H)
    apb = apb_ref[...]             # (1, 1)
    pw = _ksoftmax(poolw_ref[...], axis=-1)   # (1, 3)
    rows = []
    for b in range(B):
        hb = h[b * T:(b + 1) * T, :]                                    # (T, H)
        sc = jnp.sum(hb * apw, axis=-1, keepdims=True) + apb            # (T, 1)
        aw = _ksoftmax(sc, axis=0)
        attn_pool = jnp.sum(aw * hb, axis=0, keepdims=True)             # (1, H)
        max_pool = jnp.max(hb, axis=0, keepdims=True)
        mean_pool = jnp.mean(hb, axis=0, keepdims=True)
        rows.append(pw[:, 0:1] * attn_pool + pw[:, 1:2] * max_pool
                    + pw[:, 2:3] * mean_pool)
    pooled = jnp.concatenate(rows, axis=0)                              # (B, H)

    # ---- projection head: LN -> Linear(H, 2H) -> GELU -> Linear(2H, H) ----
    p = _layernorm(pooled, plng_ref[...], plnb_ref[...])
    p = _gelu(jnp.dot(p, pw1_ref[...], preferred_element_type=f32) + pb1_ref[...])
    p = jnp.dot(p, pw2_ref[...], preferred_element_type=f32) + pb2_ref[...]

    # ---- classifier (lane-dense: 128-wide padded output) ----
    o_ref[...] = jnp.dot(p, cw_ref[...], preferred_element_type=f32) + cb_ref[...]


# ================= glue: RoPE tables + single pallas_call wrapper =================

def rope_cos_sin(seq_len, dim):
    inv_freq = 1.0 / (10000.0 ** (jnp.arange(0, dim, 2, dtype=jnp.float32) / dim))
    t = jnp.arange(seq_len, dtype=jnp.float32)
    freqs = t[:, None] * inv_freq[None, :]
    emb = jnp.concatenate([freqs, freqs], axis=-1)            # (T, dim)
    return jnp.cos(emb), jnp.sin(emb)


@jax.jit
def advanced_transformer_pallas(params, x):
    B, T, _ = x.shape
    x2d = x.reshape(B * T, INPUT_SIZE)

    # RoPE tables, pre-tiled over batch -> (B*T, H)
    cos, sin = rope_cos_sin(T, HEAD_DIM)
    cos_bt = jnp.tile(cos, (B, 1))
    sin_bt = jnp.tile(sin, (B, 1))

    # rotate_half as a signed permutation matrix:
    #   rot[:, i] = -h[:, i+half]  (i <  half)
    #   rot[:, i] =  h[:, i-half]  (i >= half)
    half = HIDDEN_SIZE // 2
    col = jnp.arange(HIDDEN_SIZE)
    src = (col + half) % HIDDEN_SIZE
    sign = jnp.where(col < half, -1.0, 1.0).astype(jnp.float32)
    rot_mat = jnp.zeros((HIDDEN_SIZE, HIDDEN_SIZE), jnp.float32).at[src, col].set(sign)

    # block-diagonal attention mask so all batches share one (B*T, B*T) softmax
    seg = jnp.repeat(jnp.arange(B, dtype=jnp.int32), T)
    attn_mask = jnp.where(seg[:, None] == seg[None, :], 0.0, -1e9).astype(jnp.float32)

    # lane-dense classifier weights (padded columns produce zeros, sliced off below)
    cw_pad = jnp.zeros((HIDDEN_SIZE, PAD_CLASSES), jnp.float32).at[:, :N_CLASSES].set(
        params['cls_w'])
    cb_pad = jnp.zeros((1, PAD_CLASSES), jnp.float32).at[:, :N_CLASSES].set(
        params['cls_b'])

    inputs = [x2d, params['input_proj_w'], params['input_proj_b'],
              cos_bt, sin_bt, rot_mat, attn_mask,
              params['pool_w'], params['pool_attn_w'], params['pool_attn_b'],
              params['proj_ln_g'], params['proj_ln_b'],
              params['proj_w1'], params['proj_b1'],
              params['proj_w2'], params['proj_b2'],
              cw_pad, cb_pad]
    for layer in params['layers']:
        inputs += [layer['ln1_g'], layer['ln1_b'], layer['ln2_g'], layer['ln2_b'],
                   layer['mlp_w1'], layer['mlp_b1'], layer['mlp_w2'], layer['mlp_b2']]

    out = pl.pallas_call(
        functools.partial(_fused_forward_kernel, B, T),
        out_shape=jax.ShapeDtypeStruct((B, PAD_CLASSES), jnp.float32),
        in_specs=_vmem_specs(len(inputs)),
        out_specs=pl.BlockSpec(memory_space=pltpu.MemorySpace.VMEM),
    )(*inputs)
    return out[:, :N_CLASSES]


# ================= pure-JAX reference (for correctness check) =================

def advanced_transformer_ref(params, x):
    B, T, _ = x.shape
    h = (x.reshape(B * T, INPUT_SIZE) @ params['input_proj_w']
         + params['input_proj_b']).reshape(B, T, HIDDEN_SIZE)
    cos, sin = rope_cos_sin(T, HEAD_DIM)
    half = HIDDEN_SIZE // 2
    for layer in params['layers']:
        hn = _layernorm(h, layer['ln1_g'], layer['ln1_b'])
        rot = jnp.concatenate([-hn[..., half:], hn[..., :half]], axis=-1)
        q = hn * cos + rot * sin
        logits = jnp.einsum('btd,bsd->bts', q, q) / math.sqrt(HEAD_DIM)
        attn = _softmax_ref(logits, axis=-1)
        h = h + jnp.einsum('bts,bsd->btd', attn, hn)
        h2 = _layernorm(h, layer['ln2_g'], layer['ln2_b'])
        m = _gelu(h2 @ layer['mlp_w1'] + layer['mlp_b1'])
        h = h + (m @ layer['mlp_w2'] + layer['mlp_b2'])
    scores = jnp.sum(h * params['pool_attn_w'], axis=-1, keepdims=True) + params['pool_attn_b']
    aw = _softmax_ref(scores, axis=1)
    attn_pool = jnp.sum(aw * h, axis=1)
    max_pool = jnp.max(h, axis=1)
    mean_pool = jnp.mean(h, axis=1)
    w = _softmax_ref(params['pool_w'], axis=-1)
    pooled = w[:, 0:1] * attn_pool + w[:, 1:2] * max_pool + w[:, 2:3] * mean_pool
    p = _layernorm(pooled, params['proj_ln_g'], params['proj_ln_b'])
    p = _gelu(p @ params['proj_w1'] + params['proj_b1'])
    p = p @ params['proj_w2'] + params['proj_b2']
    return p @ params['cls_w'] + params['cls_b']


# ================= deterministic parameter init (mirrors _init_weights) =================

def init_params(key):
    def xavier(k, fan_in, fan_out):
        std = math.sqrt(2.0 / (fan_in + fan_out))
        return std * jax.random.normal(k, (fan_in, fan_out), dtype=jnp.float32)

    ki = iter(jax.random.split(key, 8 + 2 * NUM_LAYERS))
    params = {
        'input_proj_w': xavier(next(ki), INPUT_SIZE, HIDDEN_SIZE),
        'input_proj_b': jnp.zeros((1, HIDDEN_SIZE), jnp.float32),
        'layers': [],
        'pool_w': jnp.ones((1, 3), jnp.float32),                       # MultiPooling.weights
        'pool_attn_w': xavier(next(ki), HIDDEN_SIZE, 1).reshape(1, HIDDEN_SIZE),
        'pool_attn_b': jnp.zeros((1, 1), jnp.float32),
        'proj_ln_g': jnp.ones((1, HIDDEN_SIZE), jnp.float32),
        'proj_ln_b': jnp.zeros((1, HIDDEN_SIZE), jnp.float32),
        'proj_w1': xavier(next(ki), HIDDEN_SIZE, 2 * HIDDEN_SIZE),
        'proj_b1': jnp.zeros((1, 2 * HIDDEN_SIZE), jnp.float32),
        'proj_w2': xavier(next(ki), 2 * HIDDEN_SIZE, HIDDEN_SIZE),
        'proj_b2': jnp.zeros((1, HIDDEN_SIZE), jnp.float32),
        'cls_w': xavier(next(ki), HIDDEN_SIZE, N_CLASSES),
        'cls_b': jnp.zeros((1, N_CLASSES), jnp.float32),
    }
    for _ in range(NUM_LAYERS):
        params['layers'].append({
            'ln1_g': jnp.ones((1, HIDDEN_SIZE), jnp.float32),
            'ln1_b': jnp.zeros((1, HIDDEN_SIZE), jnp.float32),
            'ln2_g': jnp.ones((1, HIDDEN_SIZE), jnp.float32),
            'ln2_b': jnp.zeros((1, HIDDEN_SIZE), jnp.float32),
            'mlp_w1': xavier(next(ki), HIDDEN_SIZE, INTERMEDIATE_SIZE),
            'mlp_b1': jnp.zeros((1, INTERMEDIATE_SIZE), jnp.float32),
            'mlp_w2': xavier(next(ki), INTERMEDIATE_SIZE, HIDDEN_SIZE),
            'mlp_b2': jnp.zeros((1, HIDDEN_SIZE), jnp.float32),
        })
    return params


if __name__ == "__main__":
    key = jax.random.PRNGKey(0)
    pkey, xkey = jax.random.split(key)
    params = init_params(pkey)
    x = jax.random.normal(xkey, (2, 8, INPUT_SIZE), dtype=jnp.float32)

    out = advanced_transformer_pallas(params, x)
    out = jax.block_until_ready(out)
    assert out.shape == (2, N_CLASSES)

    with jax.default_matmul_precision('float32'):
        ref = advanced_transformer_ref(params, x)
    max_err = float(jnp.max(jnp.abs(out - ref)))
    # tolerance covers the approx-reciprocal softmax (only numerics-visible change)
    assert jnp.allclose(out, ref, rtol=1e-2, atol=1e-2), f"max abs err {max_err}"

    print("KERNEL_OK")
</pallas_src>

<mosaic_0001>
module attributes {stable_mosaic.version = 11 : i64} {
  func.func @_fused_forward_kernel(%arg0: memref<16x16xf32, #tpu.memory_space<vmem>>, %arg1: memref<16x32xf32, #tpu.memory_space<vmem>>, %arg2: memref<1x32xf32, #tpu.memory_space<vmem>>, %arg3: memref<16x32xf32, #tpu.memory_space<vmem>>, %arg4: memref<16x32xf32, #tpu.memory_space<vmem>>, %arg5: memref<32x32xf32, #tpu.memory_space<vmem>>, %arg6: memref<16x16xf32, #tpu.memory_space<vmem>>, %arg7: memref<1x3xf32, #tpu.memory_space<vmem>>, %arg8: memref<1x32xf32, #tpu.memory_space<vmem>>, %arg9: memref<1x1xf32, #tpu.memory_space<vmem>>, %arg10: memref<1x32xf32, #tpu.memory_space<vmem>>, %arg11: memref<1x32xf32, #tpu.memory_space<vmem>>, %arg12: memref<32x64xf32, #tpu.memory_space<vmem>>, %arg13: memref<1x64xf32, #tpu.memory_space<vmem>>, %arg14: memref<64x32xf32, #tpu.memory_space<vmem>>, %arg15: memref<1x32xf32, #tpu.memory_space<vmem>>, %arg16: memref<32x128xf32, #tpu.memory_space<vmem>>, %arg17: memref<1x128xf32, #tpu.memory_space<vmem>>, %arg18: memref<1x32xf32, #tpu.memory_space<vmem>>, %arg19: memref<1x32xf32, #tpu.memory_space<vmem>>, %arg20: memref<1x32xf32, #tpu.memory_space<vmem>>, %arg21: memref<1x32xf32, #tpu.memory_space<vmem>>, %arg22: memref<32x64xf32, #tpu.memory_space<vmem>>, %arg23: memref<1x64xf32, #tpu.memory_space<vmem>>, %arg24: memref<64x32xf32, #tpu.memory_space<vmem>>, %arg25: memref<1x32xf32, #tpu.memory_space<vmem>>, %arg26: memref<1x32xf32, #tpu.memory_space<vmem>>, %arg27: memref<1x32xf32, #tpu.memory_space<vmem>>, %arg28: memref<1x32xf32, #tpu.memory_space<vmem>>, %arg29: memref<1x32xf32, #tpu.memory_space<vmem>>, %arg30: memref<32x64xf32, #tpu.memory_space<vmem>>, %arg31: memref<1x64xf32, #tpu.memory_space<vmem>>, %arg32: memref<64x32xf32, #tpu.memory_space<vmem>>, %arg33: memref<1x32xf32, #tpu.memory_space<vmem>>, %arg34: memref<2x128xf32, #tpu.memory_space<vmem>>) attributes {dimension_semantics = [], scalar_prefetch = 0 : i64, scratch_operands = 0 : i64, tpu.core_type = #tpu.core_type<tc>} {
    %c0 = arith.constant 0 : index
    %c0_0 = arith.constant 0 : index
    %0 = vector.load %arg0[%c0, %c0_0] : memref<16x16xf32, #tpu.memory_space<vmem>>, vector<16x16xf32>
    %c0_1 = arith.constant 0 : index
    %c0_2 = arith.constant 0 : index
    %1 = vector.load %arg1[%c0_1, %c0_2] : memref<16x32xf32, #tpu.memory_space<vmem>>, vector<16x32xf32>
    %cst = arith.constant dense<0.000000e+00> : vector<16x32xf32>
    %2 = tpu.matmul %0, %1, %cst {dimension_numbers = #tpu.dot_dimension_numbers<[1], [0], [0], [1], [0, 0, 1, 1], [], []>} : vector<16x16xf32>, vector<16x32xf32>, vector<16x32xf32> -> vector<16x32xf32>
    %c0_3 = arith.constant 0 : index
    %c0_4 = arith.constant 0 : index
    %3 = vector.load %arg2[%c0_3, %c0_4] : memref<1x32xf32, #tpu.memory_space<vmem>>, vector<1x32xf32>
    %4 = vector.broadcast %3 : vector<1x32xf32> to vector<16x32xf32>
    %5 = arith.addf %2, %4 : vector<16x32xf32>
    %c0_5 = arith.constant 0 : index
    %c0_6 = arith.constant 0 : index
    %6 = vector.load %arg3[%c0_5, %c0_6] : memref<16x32xf32, #tpu.memory_space<vmem>>, vector<16x32xf32>
    %c0_7 = arith.constant 0 : index
    %c0_8 = arith.constant 0 : index
    %7 = vector.load %arg4[%c0_7, %c0_8] : memref<16x32xf32, #tpu.memory_space<vmem>>, vector<16x32xf32>
    %c0_9 = arith.constant 0 : index
    %c0_10 = arith.constant 0 : index
    %8 = vector.load %arg5[%c0_9, %c0_10] : memref<32x32xf32, #tpu.memory_space<vmem>>, vector<32x32xf32>
    %c0_11 = arith.constant 0 : index
    %c0_12 = arith.constant 0 : index
    %9 = vector.load %arg6[%c0_11, %c0_12] : memref<16x16xf32, #tpu.memory_space<vmem>>, vector<16x16xf32>
    %c0_13 = arith.constant 0 : index
    %c0_14 = arith.constant 0 : index
    %10 = vector.load %arg18[%c0_13, %c0_14] : memref<1x32xf32, #tpu.memory_space<vmem>>, vector<1x32xf32>
    %c0_15 = arith.constant 0 : index
    %c0_16 = arith.constant 0 : index
    %11 = vector.load %arg19[%c0_15, %c0_16] : memref<1x32xf32, #tpu.memory_space<vmem>>, vector<1x32xf32>
    %cst_17 = arith.constant dense<0.000000e+00> : vector<16xf32>
    %12 = vector.multi_reduction <add>, %5, %cst_17 [1] : vector<16x32xf32> to vector<16xf32>
    %13 = vector.shape_cast %12 : vector<16xf32> to vector<16x1xf32>
    %cst_18 = arith.constant 3.200000e+01 : f32
    %14 = vector.broadcast %cst_18 : f32 to vector<16x1xf32>
    %15 = arith.divf %13, %14 : vector<16x1xf32>
    %16 = vector.broadcast %15 : vector<16x1xf32> to vector<16x32xf32>
    %17 = arith.subf %5, %16 : vector<16x32xf32>
    %18 = arith.mulf %17, %17 : vector<16x32xf32>
    %cst_19 = arith.constant dense<0.000000e+00> : vector<16xf32>
    %19 = vector.multi_reduction <add>, %18, %cst_19 [1] : vector<16x32xf32> to vector<16xf32>
    %20 = vector.shape_cast %19 : vector<16xf32> to vector<16x1xf32>
    %cst_20 = arith.constant 3.200000e+01 : f32
    %21 = vector.broadcast %cst_20 : f32 to vector<16x1xf32>
    %22 = arith.divf %20, %21 : vector<16x1xf32>
    %23 = vector.broadcast %15 : vector<16x1xf32> to vector<16x32xf32>
    %24 = arith.subf %5, %23 : vector<16x32xf32>
    %cst_21 = arith.constant 9.99999974E-6 : f32
    %25 = vector.broadcast %cst_21 : f32 to vector<16x1xf32>
    %26 = arith.addf %22, %25 : vector<16x1xf32>
    %27 = math.rsqrt %26 : vector<16x1xf32>
    %28 = vector.broadcast %27 : vector<16x1xf32> to vector<16x32xf32>
    %29 = arith.mulf %24, %28 : vector<16x32xf32>
    %30 = vector.broadcast %10 : vector<1x32xf32> to vector<16x32xf32>
    %31 = arith.mulf %29, %30 : vector<16x32xf32>
    %32 = vector.broadcast %11 : vector<1x32xf32> to vector<16x32xf32>
    %33 = arith.addf %31, %32 : vector<16x32xf32>
    %34 = arith.mulf %33, %6 : vector<16x32xf32>
    %cst_22 = arith.constant dense<0.000000e+00> : vector<16x32xf32>
    %35 = tpu.matmul %33, %8, %cst_22 {dimension_numbers = #tpu.dot_dimension_numbers<[1], [0], [0], [1], [0, 0, 1, 1], [], []>} : vector<16x32xf32>, vector<32x32xf32>, vector<16x32xf32> -> vector<16x32xf32>
    %36 = arith.mulf %35, %7 : vector<16x32xf32>
    %37 = arith.addf %34, %36 : vector<16x32xf32>
    %cst_23 = arith.constant dense<0.000000e+00> : vector<16x16xf32>
    %38 = tpu.matmul %37, %37, %cst_23 {dimension_numbers = #tpu.dot_dimension_numbers<[1], [1], [0], [0], [0, 0, 1, 0], [], []>} : vector<16x32xf32>, vector<16x32xf32>, vector<16x16xf32> -> vector<16x16xf32>
    %cst_24 = arith.constant 0.176776692 : f32
    %39 = vector.broadcast %cst_24 : f32 to vector<16x16xf32>
    %40 = arith.mulf %38, %39 : vector<16x16xf32>
    %41 = arith.addf %40, %9 : vector<16x16xf32>
    %cst_25 = arith.constant dense<0xFF800000> : vector<16xf32>
    %42 = vector.multi_reduction <maximumf>, %41, %cst_25 [1] : vector<16x16xf32> to vector<16xf32>
    %43 = vector.shape_cast %42 : vector<16xf32> to vector<16x1xf32>
    %44 = vector.broadcast %43 : vector<16x1xf32> to vector<16x16xf32>
    %45 = arith.subf %41, %44 : vector<16x16xf32>
    %46 = math.exp %45 : vector<16x16xf32>
    %cst_26 = arith.constant dense<0.000000e+00> : vector<16xf32>
    %47 = vector.multi_reduction <add>, %46, %cst_26 [1] : vector<16x16xf32> to vector<16xf32>
    %48 = vector.shape_cast %47 : vector<16xf32> to vector<16x1xf32>
    %49 = tpu.reciprocal %48 {approx = true} : vector<16x1xf32> -> vector<16x1xf32>
    %50 = vector.broadcast %49 : vector<16x1xf32> to vector<16x16xf32>
    %51 = arith.mulf %46, %50 : vector<16x16xf32>
    %cst_27 = arith.constant dense<0.000000e+00> : vector<16x32xf32>
    %52 = tpu.matmul %51, %33, %cst_27 {dimension_numbers = #tpu.dot_dimension_numbers<[1], [0], [0], [1], [0, 0, 1, 1], [], []>} : vector<16x16xf32>, vector<16x32xf32>, vector<16x32xf32> -> vector<16x32xf32>
    %53 = arith.addf %5, %52 : vector<16x32xf32>
    %c0_28 = arith.constant 0 : index
    %c0_29 = arith.constant 0 : index
    %54 = vector.load %arg20[%c0_28, %c0_29] : memref<1x32xf32, #tpu.memory_space<vmem>>, vector<1x32xf32>
    %c0_30 = arith.constant 0 : index
    %c0_31 = arith.constant 0 : index
    %55 = vector.load %arg21[%c0_30, %c0_31] : memref<1x32xf32, #tpu.memory_space<vmem>>, vector<1x32xf32>
    %cst_32 = arith.constant dense<0.000000e+00> : vector<16xf32>
    %56 = vector.multi_reduction <add>, %53, %cst_32 [1] : vector<16x32xf32> to vector<16xf32>
    %57 = vector.shape_cast %56 : vector<16xf32> to vector<16x1xf32>
    %cst_33 = arith.constant 3.200000e+01 : f32
    %58 = vector.broadcast %cst_33 : f32 to vector<16x1xf32>
    %59 = arith.divf %57, %58 : vector<16x1xf32>
    %60 = vector.broadcast %59 : vector<16x1xf32> to vector<16x32xf32>
    %61 = arith.subf %53, %60 : vector<16x32xf32>
    %62 = arith.mulf %61, %61 : vector<16x32xf32>
    %cst_34 = arith.constant dense<0.000000e+00> : vector<16xf32>
    %63 = vector.multi_reduction <add>, %62, %cst_34 [1] : vector<16x32xf32> to vector<16xf32>
    %64 = vector.shape_cast %63 : vector<16xf32> to vector<16x1xf32>
    %cst_35 = arith.constant 3.200000e+01 : f32
    %65 = vector.broadcast %cst_35 : f32 to vector<16x1xf32>
    %66 = arith.divf %64, %65 : vector<16x1xf32>
    %67 = vector.broadcast %59 : vector<16x1xf32> to vector<16x32xf32>
    %68 = arith.subf %53, %67 : vector<16x32xf32>
    %cst_36 = arith.constant 9.99999974E-6 : f32
    %69 = vector.broadcast %cst_36 : f32 to vector<16x1xf32>
    %70 = arith.addf %66, %69 : vector<16x1xf32>
    %71 = math.rsqrt %70 : vector<16x1xf32>
    %72 = vector.broadcast %71 : vector<16x1xf32> to vector<16x32xf32>
    %73 = arith.mulf %68, %72 : vector<16x32xf32>
    %74 = vector.broadcast %54 : vector<1x32xf32> to vector<16x32xf32>
    %75 = arith.mulf %73, %74 : vector<16x32xf32>
    %76 = vector.broadcast %55 : vector<1x32xf32> to vector<16x32xf32>
    %77 = arith.addf %75, %76 : vector<16x32xf32>
    %c0_37 = arith.constant 0 : index
    %c0_38 = arith.constant 0 : index
    %78 = vector.load %arg22[%c0_37, %c0_38] : memref<32x64xf32, #tpu.memory_space<vmem>>, vector<32x64xf32>
    %cst_39 = arith.constant dense<0.000000e+00> : vector<16x64xf32>
    %79 = tpu.matmul %77, %78, %cst_39 {dimension_numbers = #tpu.dot_dimension_numbers<[1], [0], [0], [1], [0, 0, 1, 1], [], []>} : vector<16x32xf32>, vector<32x64xf32>, vector<16x64xf32> -> vector<16x64xf32>
    %c0_40 = arith.constant 0 : index
    %c0_41 = arith.constant 0 : index
    %80 = vector.load %arg23[%c0_40, %c0_41] : memref<1x64xf32, #tpu.memory_space<vmem>>, vector<1x64xf32>
    %81 = vector.broadcast %80 : vector<1x64xf32> to vector<16x64xf32>
    %82 = arith.addf %79, %81 : vector<16x64xf32>
    %cst_42 = arith.constant 5.000000e-01 : f32
    %83 = vector.broadcast %cst_42 : f32 to vector<16x64xf32>
    %84 = arith.mulf %83, %82 : vector<16x64xf32>
    %cst_43 = arith.constant 0.707106769 : f32
    %85 = vector.broadcast %cst_43 : f32 to vector<16x64xf32>
    %86 = arith.mulf %82, %85 : vector<16x64xf32>
    %87 = math.erf %86 : vector<16x64xf32>
    %cst_44 = arith.constant 1.000000e+00 : f32
    %88 = vector.broadcast %cst_44 : f32 to vector<16x64xf32>
    %89 = arith.addf %88, %87 : vector<16x64xf32>
    %90 = arith.mulf %84, %89 : vector<16x64xf32>
    %c0_45 = arith.constant 0 : index
    %c0_46 = arith.constant 0 : index
    %91 = vector.load %arg24[%c0_45, %c0_46] : memref<64x32xf32, #tpu.memory_space<vmem>>, vector<64x32xf32>
    %cst_47 = arith.constant dense<0.000000e+00> : vector<16x32xf32>
    %92 = tpu.matmul %90, %91, %cst_47 {dimension_numbers = #tpu.dot_dimension_numbers<[1], [0], [0], [1], [0, 0, 1, 1], [], []>} : vector<16x64xf32>, vector<64x32xf32>, vector<16x32xf32> -> vector<16x32xf32>
    %93 = arith.addf %53, %92 : vector<16x32xf32>
    %c0_48 = arith.constant 0 : index
    %c0_49 = arith.constant 0 : index
    %94 = vector.load %arg25[%c0_48, %c0_49] : memref<1x32xf32, #tpu.memory_space<vmem>>, vector<1x32xf32>
    %95 = vector.broadcast %94 : vector<1x32xf32> to vector<16x32xf32>
    %96 = arith.addf %93, %95 : vector<16x32xf32>
    %c0_50 = arith.constant 0 : index
    %c0_51 = arith.constant 0 : index
    %97 = vector.load %arg26[%c0_50, %c0_51] : memref<1x32xf32, #tpu.memory_space<vmem>>, vector<1x32xf32>
    %c0_52 = arith.constant 0 : index
    %c0_53 = arith.constant 0 : index
    %98 = vector.load %arg27[%c0_52, %c0_53] : memref<1x32xf32, #tpu.memory_space<vmem>>, vector<1x32xf32>
    %cst_54 = arith.constant dense<0.000000e+00> : vector<16xf32>
    %99 = vector.multi_reduction <add>, %96, %cst_54 [1] : vector<16x32xf32> to vector<16xf32>
    %100 = vector.shape_cast %99 : vector<16xf32> to vector<16x1xf32>
    %cst_55 = arith.constant 3.200000e+01 : f32
    %101 = vector.broadcast %cst_55 : f32 to vector<16x1xf32>
    %102 = arith.divf %100, %101 : vector<16x1xf32>
    %103 = vector.broadcast %102 : vector<16x1xf32> to vector<16x32xf32>
    %104 = arith.subf %96, %103 : vector<16x32xf32>
    %105 = arith.mulf %104, %104 : vector<16x32xf32>
    %cst_56 = arith.constant dense<0.000000e+00> : vector<16xf32>
    %106 = vector.multi_reduction <add>, %105, %cst_56 [1] : vector<16x32xf32> to vector<16xf32>
    %107 = vector.shape_cast %106 : vector<16xf32> to vector<16x1xf32>
    %cst_57 = arith.constant 3.200000e+01 : f32
    %108 = vector.broadcast %cst_57 : f32 to vector<16x1xf32>
    %109 = arith.divf %107, %108 : vector<16x1xf32>
    %110 = vector.broadcast %102 : vector<16x1xf32> to vector<16x32xf32>
    %111 = arith.subf %96, %110 : vector<16x32xf32>
    %cst_58 = arith.constant 9.99999974E-6 : f32
    %112 = vector.broadcast %cst_58 : f32 to vector<16x1xf32>
    %113 = arith.addf %109, %112 : vector<16x1xf32>
    %114 = math.rsqrt %113 : vector<16x1xf32>
    %115 = vector.broadcast %114 : vector<16x1xf32> to vector<16x32xf32>
    %116 = arith.mulf %111, %115 : vector<16x32xf32>
    %117 = vector.broadcast %97 : vector<1x32xf32> to vector<16x32xf32>
    %118 = arith.mulf %116, %117 : vector<16x32xf32>
    %119 = vector.broadcast %98 : vector<1x32xf32> to vector<16x32xf32>
    %120 = arith.addf %118, %119 : vector<16x32xf32>
    %121 = arith.mulf %120, %6 : vector<16x32xf32>
    %cst_59 = arith.constant dense<0.000000e+00> : vector<16x32xf32>
    %122 = tpu.matmul %120, %8, %cst_59 {dimension_numbers = #tpu.dot_dimension_numbers<[1], [0], [0], [1], [0, 0, 1, 1], [], []>} : vector<16x32xf32>, vector<32x32xf32>, vector<16x32xf32> -> vector<16x32xf32>
    %123 = arith.mulf %122, %7 : vector<16x32xf32>
    %124 = arith.addf %121, %123 : vector<16x32xf32>
    %cst_60 = arith.constant dense<0.000000e+00> : vector<16x16xf32>
    %125 = tpu.matmul %124, %124, %cst_60 {dimension_numbers = #tpu.dot_dimension_numbers<[1], [1], [0], [0], [0, 0, 1, 0], [], []>} : vector<16x32xf32>, vector<16x32xf32>, vector<16x16xf32> -> vector<16x16xf32>
    %cst_61 = arith.constant 0.176776692 : f32
    %126 = vector.broadcast %cst_61 : f32 to vector<16x16xf32>
    %127 = arith.mulf %125, %126 : vector<16x16xf32>
    %128 = arith.addf %127, %9 : vector<16x16xf32>
    %cst_62 = arith.constant dense<0xFF800000> : vector<16xf32>
    %129 = vector.multi_reduction <maximumf>, %128, %cst_62 [1] : vector<16x16xf32> to vector<16xf32>
    %130 = vector.shape_cast %129 : vector<16xf32> to vector<16x1xf32>
    %131 = vector.broadcast %130 : vector<16x1xf32> to vector<16x16xf32>
    %132 = arith.subf %128, %131 : vector<16x16xf32>
    %133 = math.exp %132 : vector<16x16xf32>
    %cst_63 = arith.constant dense<0.000000e+00> : vector<16xf32>
    %134 = vector.multi_reduction <add>, %133, %cst_63 [1] : vector<16x16xf32> to vector<16xf32>
    %135 = vector.shape_cast %134 : vector<16xf32> to vector<16x1xf32>
    %136 = tpu.reciprocal %135 {approx = true} : vector<16x1xf32> -> vector<16x1xf32>
    %137 = vector.broadcast %136 : vector<16x1xf32> to vector<16x16xf32>
    %138 = arith.mulf %133, %137 : vector<16x16xf32>
    %cst_64 = arith.constant dense<0.000000e+00> : vector<16x32xf32>
    %139 = tpu.matmul %138, %120, %cst_64 {dimension_numbers = #tpu.dot_dimension_numbers<[1], [0], [0], [1], [0, 0, 1, 1], [], []>} : vector<16x16xf32>, vector<16x32xf32>, vector<16x32xf32> -> vector<16x32xf32>
    %140 = arith.addf %96, %139 : vector<16x32xf32>
    %c0_65 = arith.constant 0 : index
    %c0_66 = arith.constant 0 : index
    %141 = vector.load %arg28[%c0_65, %c0_66] : memref<1x32xf32, #tpu.memory_space<vmem>>, vector<1x32xf32>
    %c0_67 = arith.constant 0 : index
    %c0_68 = arith.constant 0 : index
    %142 = vector.load %arg29[%c0_67, %c0_68] : memref<1x32xf32, #tpu.memory_space<vmem>>, vector<1x32xf32>
    %cst_69 = arith.constant dense<0.000000e+00> : vector<16xf32>
    %143 = vector.multi_reduction <add>, %140, %cst_69 [1] : vector<16x32xf32> to vector<16xf32>
    %144 = vector.shape_cast %143 : vector<16xf32> to vector<16x1xf32>
    %cst_70 = arith.constant 3.200000e+01 : f32
    %145 = vector.broadcast %cst_70 : f32 to vector<16x1xf32>
    %146 = arith.divf %144, %145 : vector<16x1xf32>
    %147 = vector.broadcast %146 : vector<16x1xf32> to vector<16x32xf32>
    %148 = arith.subf %140, %147 : vector<16x32xf32>
    %149 = arith.mulf %148, %148 : vector<16x32xf32>
    %cst_71 = arith.constant dense<0.000000e+00> : vector<16xf32>
    %150 = vector.multi_reduction <add>, %149, %cst_71 [1] : vector<16x32xf32> to vector<16xf32>
    %151 = vector.shape_cast %150 : vector<16xf32> to vector<16x1xf32>
    %cst_72 = arith.constant 3.200000e+01 : f32
    %152 = vector.broadcast %cst_72 : f32 to vector<16x1xf32>
    %153 = arith.divf %151, %152 : vector<16x1xf32>
    %154 = vector.broadcast %146 : vector<16x1xf32> to vector<16x32xf32>
    %155 = arith.subf %140, %154 : vector<16x32xf32>
    %cst_73 = arith.constant 9.99999974E-6 : f32
    %156 = vector.broadcast %cst_73 : f32 to vector<16x1xf32>
    %157 = arith.addf %153, %156 : vector<16x1xf32>
    %158 = math.rsqrt %157 : vector<16x1xf32>
    %159 = vector.broadcast %158 : vector<16x1xf32> to vector<16x32xf32>
    %160 = arith.mulf %155, %159 : vector<16x32xf32>
    %161 = vector.broadcast %141 : vector<1x32xf32> to vector<16x32xf32>
    %162 = arith.mulf %160, %161 : vector<16x32xf32>
    %163 = vector.broadcast %142 : vector<1x32xf32> to vector<16x32xf32>
    %164 = arith.addf %162, %163 : vector<16x32xf32>
    %c0_74 = arith.constant 0 : index
    %c0_75 = arith.constant 0 : index
    %165 = vector.load %arg30[%c0_74, %c0_75] : memref<32x64xf32, #tpu.memory_space<vmem>>, vector<32x64xf32>
    %cst_76 = arith.constant dense<0.000000e+00> : vector<16x64xf32>
    %166 = tpu.matmul %164, %165, %cst_76 {dimension_numbers = #tpu.dot_dimension_numbers<[1], [0], [0], [1], [0, 0, 1, 1], [], []>} : vector<16x32xf32>, vector<32x64xf32>, vector<16x64xf32> -> vector<16x64xf32>
    %c0_77 = arith.constant 0 : index
    %c0_78 = arith.constant 0 : index
    %167 = vector.load %arg31[%c0_77, %c0_78] : memref<1x64xf32, #tpu.memory_space<vmem>>, vector<1x64xf32>
    %168 = vector.broadcast %167 : vector<1x64xf32> to vector<16x64xf32>
    %169 = arith.addf %166, %168 : vector<16x64xf32>
    %cst_79 = arith.constant 5.000000e-01 : f32
    %170 = vector.broadcast %cst_79 : f32 to vector<16x64xf32>
    %171 = arith.mulf %170, %169 : vector<16x64xf32>
    %cst_80 = arith.constant 0.707106769 : f32
    %172 = vector.broadcast %cst_80 : f32 to vector<16x64xf32>
    %173 = arith.mulf %169, %172 : vector<16x64xf32>
    %174 = math.erf %173 : vector<16x64xf32>
    %cst_81 = arith.constant 1.000000e+00 : f32
    %175 = vector.broadcast %cst_81 : f32 to vector<16x64xf32>
    %176 = arith.addf %175, %174 : vector<16x64xf32>
    %177 = arith.mulf %171, %176 : vector<16x64xf32>
    %c0_82 = arith.constant 0 : index
    %c0_83 = arith.constant 0 : index
    %178 = vector.load %arg32[%c0_82, %c0_83] : memref<64x32xf32, #tpu.memory_space<vmem>>, vector<64x32xf32>
    %cst_84 = arith.constant dense<0.000000e+00> : vector<16x32xf32>
    %179 = tpu.matmul %177, %178, %cst_84 {dimension_numbers = #tpu.dot_dimension_numbers<[1], [0], [0], [1], [0, 0, 1, 1], [], []>} : vector<16x64xf32>, vector<64x32xf32>, vector<16x32xf32> -> vector<16x32xf32>
    %180 = arith.addf %140, %179 : vector<16x32xf32>
    %c0_85 = arith.constant 0 : index
    %c0_86 = arith.constant 0 : index
    %181 = vector.load %arg33[%c0_85, %c0_86] : memref<1x32xf32, #tpu.memory_space<vmem>>, vector<1x32xf32>
    %182 = vector.broadcast %181 : vector<1x32xf32> to vector<16x32xf32>
    %183 = arith.addf %180, %182 : vector<16x32xf32>
    %c0_87 = arith.constant 0 : index
    %c0_88 = arith.constant 0 : index
    %184 = vector.load %arg8[%c0_87, %c0_88] : memref<1x32xf32, #tpu.memory_space<vmem>>, vector<1x32xf32>
    %c0_89 = arith.constant 0 : index
    %c0_90 = arith.constant 0 : index
    %185 = vector.load %arg9[%c0_89, %c0_90] : memref<1x1xf32, #tpu.memory_space<vmem>>, vector<1x1xf32>
    %c0_91 = arith.constant 0 : index
    %c0_92 = arith.constant 0 : index
    %186 = vector.load %arg7[%c0_91, %c0_92] : memref<1x3xf32, #tpu.memory_space<vmem>>, vector<1x3xf32>
    %cst_93 = arith.constant dense<0xFF800000> : vector<1xf32>
    %187 = vector.multi_reduction <maximumf>, %186, %cst_93 [1] : vector<1x3xf32> to vector<1xf32>
    %188 = vector.shape_cast %187 : vector<1xf32> to vector<1x1xf32>
    %189 = vector.broadcast %188 : vector<1x1xf32> to vector<1x3xf32>
    %190 = arith.subf %186, %189 : vector<1x3xf32>
    %191 = math.exp %190 : vector<1x3xf32>
    %cst_94 = arith.constant dense<0.000000e+00> : vector<1xf32>
    %192 = vector.multi_reduction <add>, %191, %cst_94 [1] : vector<1x3xf32> to vector<1xf32>
    %193 = vector.shape_cast %192 : vector<1xf32> to vector<1x1xf32>
    %194 = tpu.reciprocal %193 {approx = true} : vector<1x1xf32> -> vector<1x1xf32>
    %195 = vector.broadcast %194 : vector<1x1xf32> to vector<1x3xf32>
    %196 = arith.mulf %191, %195 : vector<1x3xf32>
    %197 = vector.extract_strided_slice %183 {offsets = [0, 0], sizes = [8, 32], strides = [1, 1]} : vector<16x32xf32> to vector<8x32xf32>
    %198 = vector.broadcast %184 : vector<1x32xf32> to vector<8x32xf32>
    %199 = arith.mulf %197, %198 : vector<8x32xf32>
    %cst_95 = arith.constant dense<0.000000e+00> : vector<8xf32>
    %200 = vector.multi_reduction <add>, %199, %cst_95 [1] : vector<8x32xf32> to vector<8xf32>
    %201 = vector.shape_cast %200 : vector<8xf32> to vector<8x1xf32>
    %202 = vector.broadcast %185 : vector<1x1xf32> to vector<8x1xf32>
    %203 = arith.addf %201, %202 : vector<8x1xf32>
    %cst_96 = arith.constant dense<0xFF800000> : vector<1xf32>
    %204 = vector.multi_reduction <maximumf>, %203, %cst_96 [0] : vector<8x1xf32> to vector<1xf32>
    %205 = vector.shape_cast %204 : vector<1xf32> to vector<1x1xf32>
    %206 = vector.broadcast %205 : vector<1x1xf32> to vector<8x1xf32>
    %207 = arith.subf %203, %206 : vector<8x1xf32>
    %208 = math.exp %207 : vector<8x1xf32>
    %cst_97 = arith.constant dense<0.000000e+00> : vector<1xf32>
    %209 = vector.multi_reduction <add>, %208, %cst_97 [0] : vector<8x1xf32> to vector<1xf32>
    %210 = vector.shape_cast %209 : vector<1xf32> to vector<1x1xf32>
    %211 = tpu.reciprocal %210 {approx = true} : vector<1x1xf32> -> vector<1x1xf32>
    %212 = vector.broadcast %211 : vector<1x1xf32> to vector<8x1xf32>
    %213 = arith.mulf %208, %212 : vector<8x1xf32>
    %214 = vector.broadcast %213 : vector<8x1xf32> to vector<8x32xf32>
    %215 = arith.mulf %214, %197 : vector<8x32xf32>
    %cst_98 = arith.constant dense<0.000000e+00> : vector<32xf32>
    %216 = vector.multi_reduction <add>, %215, %cst_98 [0] : vector<8x32xf32> to vector<32xf32>
    %217 = vector.shape_cast %216 : vector<32xf32> to vector<1x32xf32>
    %cst_99 = arith.constant dense<0xFF800000> : vector<32xf32>
    %218 = vector.multi_reduction <maximumf>, %197, %cst_99 [0] : vector<8x32xf32> to vector<32xf32>
    %219 = vector.shape_cast %218 : vector<32xf32> to vector<1x32xf32>
    %cst_100 = arith.constant dense<0.000000e+00> : vector<32xf32>
    %220 = vector.multi_reduction <add>, %197, %cst_100 [0] : vector<8x32xf32> to vector<32xf32>
    %221 = vector.shape_cast %220 : vector<32xf32> to vector<1x32xf32>
    %cst_101 = arith.constant 8.000000e+00 : f32
    %222 = vector.broadcast %cst_101 : f32 to vector<1x32xf32>
    %223 = arith.divf %221, %222 : vector<1x32xf32>
    %224 = vector.extract_strided_slice %196 {offsets = [0, 0], sizes = [1, 1], strides = [1, 1]} : vector<1x3xf32> to vector<1x1xf32>
    %225 = vector.broadcast %224 : vector<1x1xf32> to vector<1x32xf32>
    %226 = arith.mulf %225, %217 : vector<1x32xf32>
    %227 = vector.extract_strided_slice %196 {offsets = [0, 1], sizes = [1, 1], strides = [1, 1]} : vector<1x3xf32> to vector<1x1xf32>
    %228 = vector.broadcast %227 : vector<1x1xf32> to vector<1x32xf32>
    %229 = arith.mulf %228, %219 : vector<1x32xf32>
    %230 = arith.addf %226, %229 : vector<1x32xf32>
    %231 = vector.extract_strided_slice %196 {offsets = [0, 2], sizes = [1, 1], strides = [1, 1]} : vector<1x3xf32> to vector<1x1xf32>
    %232 = vector.broadcast %231 : vector<1x1xf32> to vector<1x32xf32>
    %233 = arith.mulf %232, %223 : vector<1x32xf32>
    %234 = arith.addf %230, %233 : vector<1x32xf32>
    %235 = vector.extract_strided_slice %183 {offsets = [8, 0], sizes = [8, 32], strides = [1, 1]} : vector<16x32xf32> to vector<8x32xf32>
    %236 = vector.broadcast %184 : vector<1x32xf32> to vector<8x32xf32>
    %237 = arith.mulf %235, %236 : vector<8x32xf32>
    %cst_102 = arith.constant dense<0.000000e+00> : vector<8xf32>
    %238 = vector.multi_reduction <add>, %237, %cst_102 [1] : vector<8x32xf32> to vector<8xf32>
    %239 = vector.shape_cast %238 : vector<8xf32> to vector<8x1xf32>
    %240 = vector.broadcast %185 : vector<1x1xf32> to vector<8x1xf32>
    %241 = arith.addf %239, %240 : vector<8x1xf32>
    %cst_103 = arith.constant dense<0xFF800000> : vector<1xf32>
    %242 = vector.multi_reduction <maximumf>, %241, %cst_103 [0] : vector<8x1xf32> to vector<1xf32>
    %243 = vector.shape_cast %242 : vector<1xf32> to vector<1x1xf32>
    %244 = vector.broadcast %243 : vector<1x1xf32> to vector<8x1xf32>
    %245 = arith.subf %241, %244 : vector<8x1xf32>
    %246 = math.exp %245 : vector<8x1xf32>
    %cst_104 = arith.constant dense<0.000000e+00> : vector<1xf32>
    %247 = vector.multi_reduction <add>, %246, %cst_104 [0] : vector<8x1xf32> to vector<1xf32>
    %248 = vector.shape_cast %247 : vector<1xf32> to vector<1x1xf32>
    %249 = tpu.reciprocal %248 {approx = true} : vector<1x1xf32> -> vector<1x1xf32>
    %250 = vector.broadcast %249 : vector<1x1xf32> to vector<8x1xf32>
    %251 = arith.mulf %246, %250 : vector<8x1xf32>
    %252 = vector.broadcast %251 : vector<8x1xf32> to vector<8x32xf32>
    %253 = arith.mulf %252, %235 : vector<8x32xf32>
    %cst_105 = arith.constant dense<0.000000e+00> : vector<32xf32>
    %254 = vector.multi_reduction <add>, %253, %cst_105 [0] : vector<8x32xf32> to vector<32xf32>
    %255 = vector.shape_cast %254 : vector<32xf32> to vector<1x32xf32>
    %cst_106 = arith.constant dense<0xFF800000> : vector<32xf32>
    %256 = vector.multi_reduction <maximumf>, %235, %cst_106 [0] : vector<8x32xf32> to vector<32xf32>
    %257 = vector.shape_cast %256 : vector<32xf32> to vector<1x32xf32>
    %cst_107 = arith.constant dense<0.000000e+00> : vector<32xf32>
    %258 = vector.multi_reduction <add>, %235, %cst_107 [0] : vector<8x32xf32> to vector<32xf32>
    %259 = vector.shape_cast %258 : vector<32xf32> to vector<1x32xf32>
    %cst_108 = arith.constant 8.000000e+00 : f32
    %260 = vector.broadcast %cst_108 : f32 to vector<1x32xf32>
    %261 = arith.divf %259, %260 : vector<1x32xf32>
    %262 = vector.extract_strided_slice %196 {offsets = [0, 0], sizes = [1, 1], strides = [1, 1]} : vector<1x3xf32> to vector<1x1xf32>
    %263 = vector.broadcast %262 : vector<1x1xf32> to vector<1x32xf32>
    %264 = arith.mulf %263, %255 : vector<1x32xf32>
    %265 = vector.extract_strided_slice %196 {offsets = [0, 1], sizes = [1, 1], strides = [1, 1]} : vector<1x3xf32> to vector<1x1xf32>
    %266 = vector.broadcast %265 : vector<1x1xf32> to vector<1x32xf32>
    %267 = arith.mulf %266, %257 : vector<1x32xf32>
    %268 = arith.addf %264, %267 : vector<1x32xf32>
    %269 = vector.extract_strided_slice %196 {offsets = [0, 2], sizes = [1, 1], strides = [1, 1]} : vector<1x3xf32> to vector<1x1xf32>
    %270 = vector.broadcast %269 : vector<1x1xf32> to vector<1x32xf32>
    %271 = arith.mulf %270, %261 : vector<1x32xf32>
    %272 = arith.addf %268, %271 : vector<1x32xf32>
    %273 = tpu.concatenate %234, %272 in 0 : vector<1x32xf32>, vector<1x32xf32> -> vector<2x32xf32>
    %c0_109 = arith.constant 0 : index
    %c0_110 = arith.constant 0 : index
    %274 = vector.load %arg10[%c0_109, %c0_110] : memref<1x32xf32, #tpu.memory_space<vmem>>, vector<1x32xf32>
    %c0_111 = arith.constant 0 : index
    %c0_112 = arith.constant 0 : index
    %275 = vector.load %arg11[%c0_111, %c0_112] : memref<1x32xf32, #tpu.memory_space<vmem>>, vector<1x32xf32>
    %cst_113 = arith.constant dense<0.000000e+00> : vector<2xf32>
    %276 = vector.multi_reduction <add>, %273, %cst_113 [1] : vector<2x32xf32> to vector<2xf32>
    %277 = vector.shape_cast %276 : vector<2xf32> to vector<2x1xf32>
    %cst_114 = arith.constant 3.200000e+01 : f32
    %278 = vector.broadcast %cst_114 : f32 to vector<2x1xf32>
    %279 = arith.divf %277, %278 : vector<2x1xf32>
    %280 = vector.broadcast %279 : vector<2x1xf32> to vector<2x32xf32>
    %281 = arith.subf %273, %280 : vector<2x32xf32>
    %282 = arith.mulf %281, %281 : vector<2x32xf32>
    %cst_115 = arith.constant dense<0.000000e+00> : vector<2xf32>
    %283 = vector.multi_reduction <add>, %282, %cst_115 [1] : vector<2x32xf32> to vector<2xf32>
    %284 = vector.shape_cast %283 : vector<2xf32> to vector<2x1xf32>
    %cst_116 = arith.constant 3.200000e+01 : f32
    %285 = vector.broadcast %cst_116 : f32 to vector<2x1xf32>
    %286 = arith.divf %284, %285 : vector<2x1xf32>
    %287 = vector.broadcast %279 : vector<2x1xf32> to vector<2x32xf32>
    %288 = arith.subf %273, %287 : vector<2x32xf32>
    %cst_117 = arith.constant 9.99999974E-6 : f32
    %289 = vector.broadcast %cst_117 : f32 to vector<2x1xf32>
    %290 = arith.addf %286, %289 : vector<2x1xf32>
    %291 = math.rsqrt %290 : vector<2x1xf32>
    %292 = vector.broadcast %291 : vector<2x1xf32> to vector<2x32xf32>
    %293 = arith.mulf %288, %292 : vector<2x32xf32>
    %294 = vector.broadcast %274 : vector<1x32xf32> to vector<2x32xf32>
    %295 = arith.mulf %293, %294 : vector<2x32xf32>
    %296 = vector.broadcast %275 : vector<1x32xf32> to vector<2x32xf32>
    %297 = arith.addf %295, %296 : vector<2x32xf32>
    %c0_118 = arith.constant 0 : index
    %c0_119 = arith.constant 0 : index
    %298 = vector.load %arg12[%c0_118, %c0_119] : memref<32x64xf32, #tpu.memory_space<vmem>>, vector<32x64xf32>
    %cst_120 = arith.constant dense<0.000000e+00> : vector<2x64xf32>
    %299 = tpu.matmul %297, %298, %cst_120 {dimension_numbers = #tpu.dot_dimension_numbers<[1], [0], [0], [1], [0, 0, 1, 1], [], []>} : vector<2x32xf32>, vector<32x64xf32>, vector<2x64xf32> -> vector<2x64xf32>
    %c0_121 = arith.constant 0 : index
    %c0_122 = arith.constant 0 : index
    %300 = vector.load %arg13[%c0_121, %c0_122] : memref<1x64xf32, #tpu.memory_space<vmem>>, vector<1x64xf32>
    %301 = vector.broadcast %300 : vector<1x64xf32> to vector<2x64xf32>
    %302 = arith.addf %299, %301 : vector<2x64xf32>
    %cst_123 = arith.constant 5.000000e-01 : f32
    %303 = vector.broadcast %cst_123 : f32 to vector<2x64xf32>
    %304 = arith.mulf %303, %302 : vector<2x64xf32>
    %cst_124 = arith.constant 0.707106769 : f32
    %305 = vector.broadcast %cst_124 : f32 to vector<2x64xf32>
    %306 = arith.mulf %302, %305 : vector<2x64xf32>
    %307 = math.erf %306 : vector<2x64xf32>
    %cst_125 = arith.constant 1.000000e+00 : f32
    %308 = vector.broadcast %cst_125 : f32 to vector<2x64xf32>
    %309 = arith.addf %308, %307 : vector<2x64xf32>
    %310 = arith.mulf %304, %309 : vector<2x64xf32>
    %c0_126 = arith.constant 0 : index
    %c0_127 = arith.constant 0 : index
    %311 = vector.load %arg14[%c0_126, %c0_127] : memref<64x32xf32, #tpu.memory_space<vmem>>, vector<64x32xf32>
    %cst_128 = arith.constant dense<0.000000e+00> : vector<2x32xf32>
    %312 = tpu.matmul %310, %311, %cst_128 {dimension_numbers = #tpu.dot_dimension_numbers<[1], [0], [0], [1], [0, 0, 1, 1], [], []>} : vector<2x64xf32>, vector<64x32xf32>, vector<2x32xf32> -> vector<2x32xf32>
    %c0_129 = arith.constant 0 : index
    %c0_130 = arith.constant 0 : index
    %313 = vector.load %arg15[%c0_129, %c0_130] : memref<1x32xf32, #tpu.memory_space<vmem>>, vector<1x32xf32>
    %314 = vector.broadcast %313 : vector<1x32xf32> to vector<2x32xf32>
    %315 = arith.addf %312, %314 : vector<2x32xf32>
    %c0_131 = arith.constant 0 : index
    %c0_132 = arith.constant 0 : index
    %316 = vector.load %arg16[%c0_131, %c0_132] : memref<32x128xf32, #tpu.memory_space<vmem>>, vector<32x128xf32>
    %cst_133 = arith.constant dense<0.000000e+00> : vector<2x128xf32>
    %317 = tpu.matmul %315, %316, %cst_133 {dimension_numbers = #tpu.dot_dimension_numbers<[1], [0], [0], [1], [0, 0, 1, 1], [], []>} : vector<2x32xf32>, vector<32x128xf32>, vector<2x128xf32> -> vector<2x128xf32>
    %c0_134 = arith.constant 0 : index
    %c0_135 = arith.constant 0 : index
    %318 = vector.load %arg17[%c0_134, %c0_135] : memref<1x128xf32, #tpu.memory_space<vmem>>, vector<1x128xf32>
    %319 = vector.broadcast %318 : vector<1x128xf32> to vector<2x128xf32>
    %320 = arith.addf %317, %319 : vector<2x128xf32>
    %c0_136 = arith.constant 0 : index
    %c0_137 = arith.constant 0 : index
    %321 = vector.load %arg34[%c0_136, %c0_137] : memref<2x128xf32, #tpu.memory_space<vmem>>, vector<2x128xf32>
    tpu.vector_store %arg34[%c0_136, %c0_137], %320 {strides = array<i32>} : memref<2x128xf32, #tpu.memory_space<vmem>>, vector<2x128xf32>,
    return
  }
}

</mosaic_0001>

<llo_original>
// kernel: eq.10
$region0: #{eq.10}
  %s0 = inlined_call_operand.vmem [shape: s32[2,8], index: 0, kind: input, shape index: {}]
  %s1 = inlined_call_operand.vmem [shape: s32[16], index: 1, kind: output, shape index: {}]
  $region1: #{eq.10} parent=0
    #allocation0 [shape = 'u8[4096]{0}', space=vmem, size = 0x1000, scoped, tag = 'scoped mem for output reshape']
    #allocation1 [shape = 'u8[4096]{0}', space=vmem, size = 0x1000, scoped, tag = 'scoped mem for input reshape']
    %s3 = sshllo.u32 0, 2
    %v4 = vld [vmem:[%s0] sm:%s3]
    %5 = vst [vmem:[#allocation1] sm:%s3] %v4
    %v6 = vld [vmem:[#allocation1] sm:$0x1]
    %vm7 = vcmask 64512
    %8 = vst.msk [vmem:[#allocation0] sm:$0x1] %vm7, %v6
    %s9 = scalar_lea.vmem [#allocation1], 1
    %v10 = vld [vmem:[%s9] sm:$0x1]
    %11 = vrot.lane.b32.xlu0 %v10, 8
    %v12 = vpop.permute.xlu0 %11
    %vm13 = vcmask 130112
    %14 = vst.msk [vmem:[#allocation0] sm:$0x1] %vm13, %v12
    %s16 = sshllo.u32 0, 1
    %v18 = vld [vmem:[#allocation0] sm:%s16]
    %s19 = sshllo.u32 0, 1
    %20 = vst [vmem:[%s1] sm:%s19] %v18

// kernel: advanced_transformer_pallas.1
$region0: #{advanced_transformer_pallas.1}
  #allocation0 [shape = 'u32[]', space=smem, size = 0x4, offset = 0x4, fixed_abs, tag = 'smem constant byte address 0x4 - core index']
  #allocation1 [shape = 'u32[144,128]{1,0:T(1,128)}', space=vmem, size = 0x12000, scoped, tag = 'internal scratch']
  #allocation2 [shape = 'f32[1,1]{1,0:T(1,128)S(1)}', space=vmem, size = 0x200, scoped, tag = 'scoped memory for advanced_transformer_pallas.1']
  %s0 = inlined_call_operand.smem [shape: u32[35], index: -1, kind: input, shape index: {}]
  %s1 = sld [smem:[%s0]]
  %s2 = scalar_lea.smem %s0, 1
  %s3 = sld [smem:[%s2]]
  %s4 = scalar_lea.smem %s0, 2
  %s5 = sld [smem:[%s4]]
  %s6 = scalar_lea.smem %s0, 3
  %s7 = sld [smem:[%s6]]
  %s8 = scalar_lea.smem %s0, 4
  %s9 = sld [smem:[%s8]]
  %s10 = scalar_lea.smem %s0, 5
  %s11 = sld [smem:[%s10]]
  %s12 = scalar_lea.smem %s0, 6
  %s13 = sld [smem:[%s12]]
  %s14 = scalar_lea.smem %s0, 7
  %s15 = sld [smem:[%s14]]
  %s16 = scalar_lea.smem %s0, 8
  %s17 = sld [smem:[%s16]]
  %s18 = scalar_lea.smem %s0, 9
  %s19 = sld [smem:[%s18]]
  %s20 = scalar_lea.smem %s0, 10
  %s21 = sld [smem:[%s20]]
  %s22 = scalar_lea.smem %s0, 11
  %s23 = sld [smem:[%s22]]
  %s24 = scalar_lea.smem %s0, 12
  %s25 = sld [smem:[%s24]]
  %s26 = scalar_lea.smem %s0, 13
  %s27 = sld [smem:[%s26]]
  %s28 = scalar_lea.smem %s0, 14
  %s29 = sld [smem:[%s28]]
  %s30 = scalar_lea.smem %s0, 15
  %s31 = sld [smem:[%s30]]
  %s32 = scalar_lea.smem %s0, 16
  %s33 = sld [smem:[%s32]]
  %s34 = scalar_lea.smem %s0, 17
  %s35 = sld [smem:[%s34]]
  %s36 = scalar_lea.smem %s0, 18
  %s37 = sld [smem:[%s36]]
  %s38 = scalar_lea.smem %s0, 19
  %s39 = sld [smem:[%s38]]
  %s40 = scalar_lea.smem %s0, 20
  %s41 = sld [smem:[%s40]]
  %s42 = scalar_lea.smem %s0, 21
  %s43 = sld [smem:[%s42]]
  %s44 = scalar_lea.smem %s0, 22
  %s45 = sld [smem:[%s44]]
  %s46 = scalar_lea.smem %s0, 23
  %s47 = sld [smem:[%s46]]
  %s48 = scalar_lea.smem %s0, 24
  %s49 = sld [smem:[%s48]]
  %s50 = scalar_lea.smem %s0, 25
  %s51 = sld [smem:[%s50]]
  %s52 = scalar_lea.smem %s0, 26
  %s53 = sld [smem:[%s52]]
  %s54 = scalar_lea.smem %s0, 27
  %s55 = sld [smem:[%s54]]
  %s56 = scalar_lea.smem %s0, 28
  %s57 = sld [smem:[%s56]]
  %s58 = scalar_lea.smem %s0, 29
  %s59 = sld [smem:[%s58]]
  %s60 = scalar_lea.smem %s0, 30
  %s61 = sld [smem:[%s60]]
  %s62 = scalar_lea.smem %s0, 31
  %s63 = sld [smem:[%s62]]
  %s64 = scalar_lea.smem %s0, 32
  %s65 = sld [smem:[%s64]]
  %s66 = scalar_lea.smem %s0, 33
  %s67 = sld [smem:[%s66]]
  %s68 = scalar_lea.smem %s0, 34
  %s69 = sld [smem:[%s68]]
  %s70 = sld [smem:[#allocation0]]
  $region146: #{advanced_transformer_pallas.1} parent=0
    _
  %s72 = ssub.s32 1, %s70
  %s73 = scalar_select 0, %s72, %s70
  %v74 = vstv %s19
  %75 = vst [vmem:[#allocation2] sm:$0x1] %v74
  $region1: #{advanced_transformer_pallas.1} parent=0
    #allocation3 [shape = 'u8[1024]{0}', space=vmem, size = 0x400, scoped, tag = 'output window, operand 0, single buffered']
    #allocation4 [shape = 's32[1]{0}', space=sflag, size = 0x4, scoped, tag = 'scoped memory for advanced_transformer_pallas.1']
    %76 = vsyncpa [#allocation4], 0
    // Predicated region
    $region2: #{advanced_transformer_pallas.1} parent=1 // pred_check
      _
    $region3: #{advanced_transformer_pallas.1} parent=1 // pred_check_branch
      %78 = sbr.rel (0) target = $region5
    $region4: #{advanced_transformer_pallas.1} parent=1 // pred_region
      _
    $region5: #{advanced_transformer_pallas.1} parent=1 // pred_fallthru
      _
    // Predicated region
    $region6: #{advanced_transformer_pallas.1} parent=1 // pred_check
      _
    $region7: #{advanced_transformer_pallas.1} parent=1 // pred_check_branch
      %80 = sbr.rel (0) target = $region9
    $region8: #{advanced_transformer_pallas.1} parent=1 // pred_region
      _
    $region9: #{advanced_transformer_pallas.1} parent=1 // pred_fallthru
      _
    // Predicated region
    $region10: #{advanced_transformer_pallas.1} parent=1 // pred_check
      _
    $region11: #{advanced_transformer_pallas.1} parent=1 // pred_check_branch
      %82 = sbr.rel (0) target = $region13
    $region12: #{advanced_transformer_pallas.1} parent=1 // pred_region
      _
    $region13: #{advanced_transformer_pallas.1} parent=1 // pred_fallthru
      _
    // Predicated region
    $region14: #{advanced_transformer_pallas.1} parent=1 // pred_check
      _
    $region15: #{advanced_transformer_pallas.1} parent=1 // pred_check_branch
      %84 = sbr.rel (0) target = $region17
    $region16: #{advanced_transformer_pallas.1} parent=1 // pred_region
      _
    $region17: #{advanced_transformer_pallas.1} parent=1 // pred_fallthru
      _
    // Predicated region
    $region18: #{advanced_transformer_pallas.1} parent=1 // pred_check
      _
    $region19: #{advanced_transformer_pallas.1} parent=1 // pred_check_branch
      %86 = sbr.rel (0) target = $region21
    $region20: #{advanced_transformer_pallas.1} parent=1 // pred_region
      _
    $region21: #{advanced_transformer_pallas.1} parent=1 // pred_fallthru
      _
    // Predicated region
    $region22: #{advanced_transformer_pallas.1} parent=1 // pred_check
      _
    $region23: #{advanced_transformer_pallas.1} parent=1 // pred_check_branch
      %88 = sbr.rel (0) target = $region25
    $region24: #{advanced_transformer_pallas.1} parent=1 // pred_region
      _
    $region25: #{advanced_transformer_pallas.1} parent=1 // pred_fallthru
      _
    // Predicated region
    $region26: #{advanced_transformer_pallas.1} parent=1 // pred_check
      _
    $region27: #{advanced_transformer_pallas.1} parent=1 // pred_check_branch
      %90 = sbr.rel (0) target = $region29
    $region28: #{advanced_transformer_pallas.1} parent=1 // pred_region
      _
    $region29: #{advanced_transformer_pallas.1} parent=1 // pred_fallthru
      _
    // Predicated region
    $region30: #{advanced_transformer_pallas.1} parent=1 // pred_check
      _
    $region31: #{advanced_transformer_pallas.1} parent=1 // pred_check_branch
      %92 = sbr.rel (0) target = $region33
    $region32: #{advanced_transformer_pallas.1} parent=1 // pred_region
      _
    $region33: #{advanced_transformer_pallas.1} parent=1 // pred_fallthru
      _
    // Predicated region
    $region34: #{advanced_transformer_pallas.1} parent=1 // pred_check
      _
    $region35: #{advanced_transformer_pallas.1} parent=1 // pred_check_branch
      %94 = sbr.rel (0) target = $region37
    $region36: #{advanced_transformer_pallas.1} parent=1 // pred_region
      _
    $region37: #{advanced_transformer_pallas.1} parent=1 // pred_fallthru
      _
    // Predicated region
    $region38: #{advanced_transformer_pallas.1} parent=1 // pred_check
      _
    $region39: #{advanced_transformer_pallas.1} parent=1 // pred_check_branch
      %96 = sbr.rel (0) target = $region41
    $region40: #{advanced_transformer_pallas.1} parent=1 // pred_region
      _
    $region41: #{advanced_transformer_pallas.1} parent=1 // pred_fallthru
      _
    // Predicated region
    $region42: #{advanced_transformer_pallas.1} parent=1 // pred_check
      _
    $region43: #{advanced_transformer_pallas.1} parent=1 // pred_check_branch
      %98 = sbr.rel (0) target = $region45
    $region44: #{advanced_transformer_pallas.1} parent=1 // pred_region
      _
    $region45: #{advanced_transformer_pallas.1} parent=1 // pred_fallthru
      _
    // Predicated region
    $region46: #{advanced_transformer_pallas.1} parent=1 // pred_check
      _
    $region47: #{advanced_transformer_pallas.1} parent=1 // pred_check_branch
      %100 = sbr.rel (0) target = $region49
    $region48: #{advanced_transformer_pallas.1} parent=1 // pred_region
      _
    $region49: #{advanced_transformer_pallas.1} parent=1 // pred_fallthru
      _
    // Predicated region
    $region50: #{advanced_transformer_pallas.1} parent=1 // pred_check
      _
    $region51: #{advanced_transformer_pallas.1} parent=1 // pred_check_branch
      %102 = sbr.rel (0) target = $region53
    $region52: #{advanced_transformer_pallas.1} parent=1 // pred_region
      _
    $region53: #{advanced_transformer_pallas.1} parent=1 // pred_fallthru
      _
    // Predicated region
    $region54: #{advanced_transformer_pallas.1} parent=1 // pred_check
      _
    $region55: #{advanced_transformer_pallas.1} parent=1 // pred_check_branch
      %104 = sbr.rel (0) target = $region57
    $region56: #{advanced_transformer_pallas.1} parent=1 // pred_region
      _
    $region57: #{advanced_transformer_pallas.1} parent=1 // pred_fallthru
      _
    // Predicated region
    $region58: #{advanced_transformer_pallas.1} parent=1 // pred_check
      _
    $region59: #{advanced_transformer_pallas.1} parent=1 // pred_check_branch
      %106 = sbr.rel (0) target = $region61
    $region60: #{advanced_transformer_pallas.1} parent=1 // pred_region
      _
    $region61: #{advanced_transformer_pallas.1} parent=1 // pred_fallthru
      _
    // Predicated region
    $region62: #{advanced_transformer_pallas.1} parent=1 // pred_check
      _
    $region63: #{advanced_transformer_pallas.1} parent=1 // pred_check_branch
      %108 = sbr.rel (0) target = $region65
    $region64: #{advanced_transformer_pallas.1} parent=1 // pred_region
      _
    $region65: #{advanced_transformer_pallas.1} parent=1 // pred_fallthru
      _
    // Predicated region
    $region66: #{advanced_transformer_pallas.1} parent=1 // pred_check
      _
    $region67: #{advanced_transformer_pallas.1} parent=1 // pred_check_branch
      %110 = sbr.rel (0) target = $region69
    $region68: #{advanced_transformer_pallas.1} parent=1 // pred_region
      _
    $region69: #{advanced_transformer_pallas.1} parent=1 // pred_fallthru
      _
    // Predicated region
    $region70: #{advanced_transformer_pallas.1} parent=1 // pred_check
      _
    $region71: #{advanced_transformer_pallas.1} parent=1 // pred_check_branch
      %112 = sbr.rel (0) target = $region73
    $region72: #{advanced_transformer_pallas.1} parent=1 // pred_region
      _
    $region73: #{advanced_transformer_pallas.1} parent=1 // pred_fallthru
      _
    // Predicated region
    $region74: #{advanced_transformer_pallas.1} parent=1 // pred_check
      _
    $region75: #{advanced_transformer_pallas.1} parent=1 // pred_check_branch
      %114 = sbr.rel (0) target = $region77
    $region76: #{advanced_transformer_pallas.1} parent=1 // pred_region
      _
    $region77: #{advanced_transformer_pallas.1} parent=1 // pred_fallthru
      _
    // Predicated region
    $region78: #{advanced_transformer_pallas.1} parent=1 // pred_check
      _
    $region79: #{advanced_transformer_pallas.1} parent=1 // pred_check_branch
      %116 = sbr.rel (0) target = $region81
    $region80: #{advanced_transformer_pallas.1} parent=1 // pred_region
      _
    $region81: #{advanced_transformer_pallas.1} parent=1 // pred_fallthru
      _
    // Predicated region
    $region82: #{advanced_transformer_pallas.1} parent=1 // pred_check
      _
    $region83: #{advanced_transformer_pallas.1} parent=1 // pred_check_branch
      %118 = sbr.rel (0) target = $region85
    $region84: #{advanced_transformer_pallas.1} parent=1 // pred_region
      _
    $region85: #{advanced_transformer_pallas.1} parent=1 // pred_fallthru
      _
    // Predicated region
    $region86: #{advanced_transformer_pallas.1} parent=1 // pred_check
      _
    $region87: #{advanced_transformer_pallas.1} parent=1 // pred_check_branch
      %120 = sbr.rel (0) target = $region89
    $region88: #{advanced_transformer_pallas.1} parent=1 // pred_region
      _
    $region89: #{advanced_transformer_pallas.1} parent=1 // pred_fallthru
      _
    // Predicated region
    $region90: #{advanced_transformer_pallas.1} parent=1 // pred_check
      _
    $region91: #{advanced_transformer_pallas.1} parent=1 // pred_check_branch
      %122 = sbr.rel (0) target = $region93
    $region92: #{advanced_transformer_pallas.1} parent=1 // pred_region
      _
    $region93: #{advanced_transformer_pallas.1} parent=1 // pred_fallthru
      _
    // Predicated region
    $region94: #{advanced_transformer_pallas.1} parent=1 // pred_check
      _
    $region95: #{advanced_transformer_pallas.1} parent=1 // pred_check_branch
      %124 = sbr.rel (0) target = $region97
    $region96: #{advanced_transformer_pallas.1} parent=1 // pred_region
      _
    $region97: #{advanced_transformer_pallas.1} parent=1 // pred_fallthru
      _
    // Predicated region
    $region98: #{advanced_transformer_pallas.1} parent=1 // pred_check
      _
    $region99: #{advanced_transformer_pallas.1} parent=1 // pred_check_branch
      %126 = sbr.rel (0) target = $region101
    $region100: #{advanced_transformer_pallas.1} parent=1 // pred_region
      _
    $region101: #{advanced_transformer_pallas.1} parent=1 // pred_fallthru
      _
    // Predicated region
    $region102: #{advanced_transformer_pallas.1} parent=1 // pred_check
      _
    $region103: #{advanced_transformer_pallas.1} parent=1 // pred_check_branch
      %128 = sbr.rel (0) target = $region105
    $region104: #{advanced_transformer_pallas.1} parent=1 // pred_region
      _
    $region105: #{advanced_transformer_pallas.1} parent=1 // pred_fallthru
      _
    // Predicated region
    $region106: #{advanced_transformer_pallas.1} parent=1 // pred_check
      _
    $region107: #{advanced_transformer_pallas.1} parent=1 // pred_check_branch
      %130 = sbr.rel (0) target = $region109
    $region108: #{advanced_transformer_pallas.1} parent=1 // pred_region
      _
    $region109: #{advanced_transformer_pallas.1} parent=1 // pred_fallthru
      _
    // Predicated region
    $region110: #{advanced_transformer_pallas.1} parent=1 // pred_check
      _
    $region111: #{advanced_transformer_pallas.1} parent=1 // pred_check_branch
      %132 = sbr.rel (0) target = $region113
    $region112: #{advanced_transformer_pallas.1} parent=1 // pred_region
      _
    $region113: #{advanced_transformer_pallas.1} parent=1 // pred_fallthru
      _
    // Predicated region
    $region114: #{advanced_transformer_pallas.1} parent=1 // pred_check
      _
    $region115: #{advanced_transformer_pallas.1} parent=1 // pred_check_branch
      %134 = sbr.rel (0) target = $region117
    $region116: #{advanced_transformer_pallas.1} parent=1 // pred_region
      _
    $region117: #{advanced_transformer_pallas.1} parent=1 // pred_fallthru
      _
    // Predicated region
    $region118: #{advanced_transformer_pallas.1} parent=1 // pred_check
      _
    $region119: #{advanced_transformer_pallas.1} parent=1 // pred_check_branch
      %136 = sbr.rel (0) target = $region121
    $region120: #{advanced_transformer_pallas.1} parent=1 // pred_region
      _
    $region121: #{advanced_transformer_pallas.1} parent=1 // pred_fallthru
      _
    // Predicated region
    $region122: #{advanced_transformer_pallas.1} parent=1 // pred_check
      _
    $region123: #{advanced_transformer_pallas.1} parent=1 // pred_check_branch
      %138 = sbr.rel (0) target = $region125
    $region124: #{advanced_transformer_pallas.1} parent=1 // pred_region
      _
    $region125: #{advanced_transformer_pallas.1} parent=1 // pred_fallthru
      _
    // Predicated region
    $region126: #{advanced_transformer_pallas.1} parent=1 // pred_check
      _
    $region127: #{advanced_transformer_pallas.1} parent=1 // pred_check_branch
      %140 = sbr.rel (0) target = $region129
    $region128: #{advanced_transformer_pallas.1} parent=1 // pred_region
      _
    $region129: #{advanced_transformer_pallas.1} parent=1 // pred_fallthru
      _
    // Predicated region
    $region130: #{advanced_transformer_pallas.1} parent=1 // pred_check
      _
    $region131: #{advanced_transformer_pallas.1} parent=1 // pred_check_branch
      %142 = sbr.rel (0) target = $region133
    $region132: #{advanced_transformer_pallas.1} parent=1 // pred_region
      _
    $region133: #{advanced_transformer_pallas.1} parent=1 // pred_fallthru
      _
    // Predicated region
    $region134: #{advanced_transformer_pallas.1} parent=1 // pred_check
      _
    $region135: #{advanced_transformer_pallas.1} parent=1 // pred_check_branch
      %144 = sbr.rel (0) target = $region137
    $region136: #{advanced_transformer_pallas.1} parent=1 // pred_region
      _
    $region137: #{advanced_transformer_pallas.1} parent=1 // pred_fallthru
      _
    %v145 = vld [vmem:[%s1] sm:$0xff]
    %v146 = vld [vmem:[%s1 + $0x8] sm:$0xff]
    %v147 = vld [vmem:[%s3] sm:$0xff]
    %v148 = vld [vmem:[%s3 + $0x8] sm:$0xff]
    %v149 = vld [vmem:[%s5] sm:$0x1]
    %v151 = vlaneseq
    %v152 = vshrl.u32 %v151, 7
    %v153 = vsub.s32 0, %v152
    %v154 = vrot.slane %v149, %v153
    %vm156 = vcmask 130048
    %v158 = vsel %vm156, %v145, 0
    %v161 = vsel %vm156, %v146, 0
    %163 = vmatprep.subr.mxu0 0.0
    %164 = vmatpush1.msra.mxu0 %v147
    %165 = vmatprep.subr.mxu0 0.0
    %166 = vmatpush1.msra.mxu0 %v148
    %167 = vmatprep.subr.mxu0 0.0
    %168 = vmatpush1.msra.mxu0 0.0
    %169 = vmatprep.subr.mxu0 0.0
    %170 = vmatpush1.msra.mxu0 0.0
    %171 = vmatprep.subr.mxu0 0.0
    %172 = vmatpush1.msra.mxu0 0.0
    %173 = vmatprep.subr.mxu0 0.0
    %174 = vmatpush1.msra.mxu0 0.0
    %175 = vmatprep.subr.mxu0 0.0
    %176 = vmatpush1.msra.mxu0 0.0
    %177 = vmatprep.subr.mxu0 0.0
    %178 = vmatpush1.msra.mxu0 0.0
    %179 = vmatprep.subr.mxu0 0.0
    %180 = vmatpush1.msra.mxu0 0.0
    %181 = vmatprep.subr.mxu0 0.0
    %182 = vmatpush1.msra.mxu0 0.0
    %183 = vmatprep.subr.mxu0 0.0
    %184 = vmatpush1.msra.mxu0 0.0
    %185 = vmatprep.subr.mxu0 0.0
    %186 = vmatpush1.msra.mxu0 0.0
    %187 = vmatprep.subr.mxu0 0.0
    %188 = vmatpush1.msra.mxu0 0.0
    %189 = vmatprep.subr.mxu0 0.0
    %190 = vmatpush1.msra.mxu0 0.0
    %191 = vmatprep.subr.mxu0 0.0
    %192 = vmatpush1.msra.mxu0 0.0
    %193 = vmatprep.subr.mxu0 0.0
    %194 = vmatpush1.msra.mxu0 0.0
    %195 = vmatprep.subr.mxu0 0.0
    %196 = vmatpush1.msra.mxu0 0.0
    %197 = vmatprep.subr.mxu0 0.0
    %198 = vmatpush1.msra.mxu0 0.0
    %199 = vmatprep.subr.mxu0 0.0
    %200 = vmatpush1.msra.mxu0 0.0
    %201 = vmatprep.subr.mxu0 0.0
    %202 = vmatpush1.msra.mxu0 0.0
    %203 = vmatprep.subr.mxu0 0.0
    %204 = vmatpush1.msra.mxu0 0.0
    %205 = vmatprep.subr.mxu0 0.0
    %206 = vmatpush1.msra.mxu0 0.0
    %207 = vmatprep.subr.mxu0 0.0
    %208 = vmatpush1.msra.mxu0 0.0
    %209 = vmatprep.subr.mxu0 0.0
    %210 = vmatpush1.msra.mxu0 0.0
    %211 = vmatprep.subr.mxu0 0.0
    %212 = vmatpush1.msra.mxu0 0.0
    %213 = vmatprep.subr.mxu0 0.0
    %214 = vmatpush1.msra.mxu0 0.0
    %215 = vmatprep.subr.mxu0 0.0
    %216 = vmatpush1.msra.mxu0 0.0
    %217 = vmatprep.subr.mxu0 0.0
    %218 = vmatpush1.msra.mxu0 0.0
    %219 = vmatprep.subr.mxu0 0.0
    %220 = vmatpush1.msra.mxu0 0.0
    %221 = vmatprep.subr.mxu0 0.0
    %222 = vmatpush1.msra.mxu0 0.0
    %223 = vmatprep.subr.mxu0 0.0
    %224 = vmatpush1.msra.mxu0 0.0
    %225 = vmatprep.subr.mxu0 0.0
    %226 = vmatpush1.msra.mxu0 0.0
    %227 = vmatprep.mubr.f32.mxu0 0.0
    %228 = vmatmul.mubr.f32.gmra.mrb[0].mxu0 %v158
    %v229 = vpop.f32.mrb[0].mxu0
    %v230 = vadd.f32 %v154, %v229
    %v231 = vpop.f32.mrb[0].mxu0
    %232 = vmatprep.mubr.f32.mxu0 0.0
    %233 = vmatmul.mubr.f32.gmra.mrb[0].mxu0 %v161
    %v234 = vpop.f32.mrb[0].mxu0
    %v235 = vadd.f32 %v154, %v234
    %v236 = vpop.f32.mrb[0].mxu0
    %237 = vdwg.mxu0
    %v238 = vld [vmem:[%s7] sm:$0xff]
    %v239 = vld [vmem:[%s7 + $0x8] sm:$0xff]
    %v240 = vld [vmem:[%s9] sm:$0xff]
    %v241 = vld [vmem:[%s9 + $0x8] sm:$0xff]
    %v242 = vld [vmem:[%s11] sm:$0xff]
    %v243 = vld [vmem:[%s11 + $0x8] sm:$0xff]
    %v244 = vld [vmem:[%s11 + $0x10] sm:$0xff]
    %v245 = vld [vmem:[%s11 + $0x18] sm:$0xff]
    %v246 = vld [vmem:[%s13] sm:$0xff]
    %v247 = vld [vmem:[%s13 + $0x8] sm:$0xff]
    %v248 = vld [vmem:[%s37] sm:$0x1]
    %v249 = vld [vmem:[%s39] sm:$0x1]
    %vm250 = vcmask 261120
    %v251 = vsel %vm250, %v230, 0.0
    %252 = vadd.xlane.f32.xlu0 %v251
    %v253 = vpop.xlane.xlu0 %252
    %v254 = vsel %vm250, %v235, 0.0
    %255 = vadd.xlane.f32.xlu0 %v254
    %v256 = vpop.xlane.xlu0 %255
    %v257 = vrcp.pop 32.0
    %v258 = vmul.f32 %v253, %v257
    %v259 = vmul.f32 %v256, %v257
    %v260 = vsub.f32 %v230, %v258
    %v261 = vsub.f32 %v235, %v259
    %v262 = vmul.f32 %v260, %v260
    %v263 = vmul.f32 %v261, %v261
    %v264 = vsel %vm250, %v262, 0.0
    %265 = vadd.xlane.f32.xlu0 %v264
    %v266 = vpop.xlane.xlu0 %265
    %v267 = vsel %vm250, %v263, 0.0
    %268 = vadd.xlane.f32.xlu0 %v267
    %v269 = vpop.xlane.xlu0 %268
    %v270 = vmul.f32 %v266, %v257
    %v271 = vmul.f32 %v269, %v257
    %v272 = vadd.f32 %v270, 1e-05
    %v273 = vadd.f32 %v271, 1e-05
    %v274 = vrsqrt.pop %v272
    %v275 = vrsqrt.pop %v273
    %v276 = vmul.f32 %v260, %v274
    %v277 = vmul.f32 %v261, %v275
    %v279 = vlaneseq
    %v280 = vshrl.u32 %v279, 7
    %v281 = vsub.s32 0, %v280
    %v282 = vrot.slane %v248, %v281
    %v284 = vmul.f32 %v276, %v282
    %v285 = vmul.f32 %v277, %v282
    %v287 = vlaneseq
    %v288 = vshrl.u32 %v287, 7
    %v289 = vsub.s32 0, %v288
    %v290 = vrot.slane %v249, %v289
    %v292 = vadd.f32 %v284, %v290
    %v293 = vadd.f32 %v285, %v290
    %v294 = vmul.f32 %v292, %v238
    %v295 = vmul.f32 %v293, %v239
    %v297 = vsel %vm250, %v292, 0
    %v300 = vsel %vm250, %v293, 0
    %302 = vmatprep.subr.mxu0 0.0
    %303 = vmatpush1.msra.mxu0 %v242
    %304 = vmatprep.subr.mxu0 0.0
    %305 = vmatpush1.msra.mxu0 %v243
    %306 = vmatprep.subr.mxu0 0.0
    %307 = vmatpush1.msra.mxu0 %v244
    %308 = vmatprep.subr.mxu0 0.0
    %309 = vmatpush1.msra.mxu0 %v245
    %310 = vmatprep.subr.mxu0 0.0
    %311 = vmatpush1.msra.mxu0 0.0
    %312 = vmatprep.subr.mxu0 0.0
    %313 = vmatpush1.msra.mxu0 0.0
    %314 = vmatprep.subr.mxu0 0.0
    %315 = vmatpush1.msra.mxu0 0.0
    %316 = vmatprep.subr.mxu0 0.0
    %317 = vmatpush1.msra.mxu0 0.0
    %318 = vmatprep.subr.mxu0 0.0
    %319 = vmatpush1.msra.mxu0 0.0
    %320 = vmatprep.subr.mxu0 0.0
    %321 = vmatpush1.msra.mxu0 0.0
    %322 = vmatprep.subr.mxu0 0.0
    %323 = vmatpush1.msra.mxu0 0.0
    %324 = vmatprep.subr.mxu0 0.0
    %325 = vmatpush1.msra.mxu0 0.0
    %326 = vmatprep.subr.mxu0 0.0
    %327 = vmatpush1.msra.mxu0 0.0
    %328 = vmatprep.subr.mxu0 0.0
    %329 = vmatpush1.msra.mxu0 0.0
    %330 = vmatprep.subr.mxu0 0.0
    %331 = vmatpush1.msra.mxu0 0.0
    %332 = vmatprep.subr.mxu0 0.0
    %333 = vmatpush1.msra.mxu0 0.0
    %334 = vmatprep.subr.mxu0 0.0
    %335 = vmatpush1.msra.mxu0 0.0
    %336 = vmatprep.subr.mxu0 0.0
    %337 = vmatpush1.msra.mxu0 0.0
    %338 = vmatprep.subr.mxu0 0.0
    %339 = vmatpush1.msra.mxu0 0.0
    %340 = vmatprep.subr.mxu0 0.0
    %341 = vmatpush1.msra.mxu0 0.0
    %342 = vmatprep.subr.mxu0 0.0
    %343 = vmatpush1.msra.mxu0 0.0
    %344 = vmatprep.subr.mxu0 0.0
    %345 = vmatpush1.msra.mxu0 0.0
    %346 = vmatprep.subr.mxu0 0.0
    %347 = vmatpush1.msra.mxu0 0.0
    %348 = vmatprep.subr.mxu0 0.0
    %349 = vmatpush1.msra.mxu0 0.0
    %350 = vmatprep.subr.mxu0 0.0
    %351 = vmatpush1.msra.mxu0 0.0
    %352 = vmatprep.subr.mxu0 0.0
    %353 = vmatpush1.msra.mxu0 0.0
    %354 = vmatprep.subr.mxu0 0.0
    %355 = vmatpush1.msra.mxu0 0.0
    %356 = vmatprep.subr.mxu0 0.0
    %357 = vmatpush1.msra.mxu0 0.0
    %358 = vmatprep.subr.mxu0 0.0
    %359 = vmatpush1.msra.mxu0 0.0
    %360 = vmatprep.subr.mxu0 0.0
    %361 = vmatpush1.msra.mxu0 0.0
    %362 = vmatprep.subr.mxu0 0.0
    %363 = vmatpush1.msra.mxu0 0.0
    %364 = vmatprep.subr.mxu0 0.0
    %365 = vmatpush1.msra.mxu0 0.0
    %366 = vmatprep.mubr.f32.mxu0 0.0
    %367 = vmatmul.mubr.f32.gmra.mrb[0].mxu0 %v297
    %v368 = vpop.f32.mrb[0].mxu0
    %v369 = vadd.f32 0.0, %v368
    %v370 = vpop.f32.mrb[0].mxu0
    %371 = vmatprep.mubr.f32.mxu0 0.0
    %372 = vmatmul.mubr.f32.gmra.mrb[0].mxu0 %v300
    %v373 = vpop.f32.mrb[0].mxu0
    %v374 = vadd.f32 0.0, %v373
    %v375 = vpop.f32.mrb[0].mxu0
    %376 = vdwg.mxu0
    %v377 = vmul.f32 %v369, %v240
    %v378 = vmul.f32 %v374, %v241
    %v379 = vadd.f32 %v294, %v377
    %v380 = vadd.f32 %v295, %v378
    %v382 = vsel %vm250, %v379, 0
    %v385 = vsel %vm250, %v380, 0
    %387 = vmatprep.subr.mxu0 0.0
    %388 = vmatpush1.xpose.msra.mxu0 %v382
    %389 = vmatprep.subr.mxu0 0.0
    %390 = vmatpush1.xpose.msra.mxu0 %v385
    %391 = vmatprep.subr.mxu0 0.0
    %392 = vmatpush1.xpose.msra.mxu0 0.0
    %393 = vmatprep.subr.mxu0 0.0
    %394 = vmatpush1.xpose.msra.mxu0 0.0
    %395 = vmatprep.subr.mxu0 0.0
    %396 = vmatpush1.xpose.msra.mxu0 0.0
    %397 = vmatprep.subr.mxu0 0.0
    %398 = vmatpush1.xpose.msra.mxu0 0.0
    %399 = vmatprep.subr.mxu0 0.0
    %400 = vmatpush1.xpose.msra.mxu0 0.0
    %401 = vmatprep.subr.mxu0 0.0
    %402 = vmatpush1.xpose.msra.mxu0 0.0
    %403 = vmatprep.subr.mxu0 0.0
    %404 = vmatpush1.xpose.msra.mxu0 0.0
    %405 = vmatprep.subr.mxu0 0.0
    %406 = vmatpush1.xpose.msra.mxu0 0.0
    %407 = vmatprep.subr.mxu0 0.0
    %408 = vmatpush1.xpose.msra.mxu0 0.0
    %409 = vmatprep.subr.mxu0 0.0
    %410 = vmatpush1.xpose.msra.mxu0 0.0
    %411 = vmatprep.subr.mxu0 0.0
    %412 = vmatpush1.xpose.msra.mxu0 0.0
    %413 = vmatprep.subr.mxu0 0.0
    %414 = vmatpush1.xpose.msra.mxu0 0.0
    %415 = vmatprep.subr.mxu0 0.0
    %416 = vmatpush1.xpose.msra.mxu0 0.0
    %417 = vmatprep.subr.mxu0 0.0
    %418 = vmatpush1.xpose.msra.mxu0 0.0
    %419 = vmatprep.subr.mxu0 0.0
    %420 = vmatpush1.xpose.msra.mxu0 0.0
    %421 = vmatprep.subr.mxu0 0.0
    %422 = vmatpush1.xpose.msra.mxu0 0.0
    %423 = vmatprep.subr.mxu0 0.0
    %424 = vmatpush1.xpose.msra.mxu0 0.0
    %425 = vmatprep.subr.mxu0 0.0
    %426 = vmatpush1.xpose.msra.mxu0 0.0
    %427 = vmatprep.subr.mxu0 0.0
    %428 = vmatpush1.xpose.msra.mxu0 0.0
    %429 = vmatprep.subr.mxu0 0.0
    %430 = vmatpush1.xpose.msra.mxu0 0.0
    %431 = vmatprep.subr.mxu0 0.0
    %432 = vmatpush1.xpose.msra.mxu0 0.0
    %433 = vmatprep.subr.mxu0 0.0
    %434 = vmatpush1.xpose.msra.mxu0 0.0
    %435 = vmatprep.subr.mxu0 0.0
    %436 = vmatpush1.xpose.msra.mxu0 0.0
    %437 = vmatprep.subr.mxu0 0.0
    %438 = vmatpush1.xpose.msra.mxu0 0.0
    %439 = vmatprep.subr.mxu0 0.0
    %440 = vmatpush1.xpose.msra.mxu0 0.0
    %441 = vmatprep.subr.mxu0 0.0
    %442 = vmatpush1.xpose.msra.mxu0 0.0
    %443 = vmatprep.subr.mxu0 0.0
    %444 = vmatpush1.xpose.msra.mxu0 0.0
    %445 = vmatprep.subr.mxu0 0.0
    %446 = vmatpush1.xpose.msra.mxu0 0.0
    %447 = vmatprep.subr.mxu0 0.0
    %448 = vmatpush1.xpose.msra.mxu0 0.0
    %449 = vmatprep.subr.mxu0 0.0
    %450 = vmatpush1.xpose.msra.mxu0 0.0
    %451 = vmatprep.mubr.f32.mxu0 0.0
    %452 = vmatmul.mubr.f32.gmra.mrb[0].mxu0 %v382
    %v453 = vpop.f32.mrb[0].mxu0
    %v454 = vadd.f32 0.0, %v453
    %v455 = vpop.f32.mrb[0].mxu0
    %456 = vmatprep.mubr.f32.mxu0 0.0
    %457 = vmatmul.mubr.f32.gmra.mrb[0].mxu0 %v385
    %v458 = vpop.f32.mrb[0].mxu0
    %v459 = vadd.f32 0.0, %v458
    %v460 = vpop.f32.mrb[0].mxu0
    %461 = vdwg.mxu0
    %v462 = vmul.f32 %v454, 0.17677669
    %v463 = vmul.f32 %v459, 0.17677669
    %v464 = vadd.f32 %v462, %v246
    %v465 = vadd.f32 %v463, %v247
    %v466 = vsel %vm156, %v464, -inf
    %467 = vmax.xlane.f32.xlu0 %v466
    %v468 = vpop.xlane.xlu0 %467
    %v469 = vsel %vm156, %v465, -inf
    %470 = vmax.xlane.f32.xlu0 %v469
    %v471 = vpop.xlane.xlu0 %470
    %v472 = vsub.f32 %v464, %v468
    %v473 = vsub.f32 %v465, %v471
    %v474 = vmul.f32 %v472, 1.442695
    %v475 = vpow.pop %v474
    %v476 = vmul.f32 %v473, 1.442695
    %v477 = vpow.pop %v476
    %v478 = vsel %vm156, %v475, 0.0
    %479 = vadd.xlane.f32.xlu0 %v478
    %v480 = vpop.xlane.xlu0 %479
    %v481 = vsel %vm156, %v477, 0.0
    %482 = vadd.xlane.f32.xlu0 %v481
    %v483 = vpop.xlane.xlu0 %482
    %v484 = vrcp.pop %v480
    %v485 = vrcp.pop %v483
    %v486 = vmul.f32 %v475, %v484
    %v487 = vmul.f32 %v477, %v485
    %v489 = vsel %vm156, %v486, 0
    %v492 = vsel %vm156, %v487, 0
    %494 = vmatprep.subr.mxu0 0.0
    %495 = vmatpush1.msra.mxu0 %v292
    %496 = vmatprep.subr.mxu0 0.0
    %497 = vmatpush1.msra.mxu0 %v293
    %498 = vmatprep.subr.mxu0 0.0
    %499 = vmatpush1.msra.mxu0 0.0
    %500 = vmatprep.subr.mxu0 0.0
    %501 = vmatpush1.msra.mxu0 0.0
    %502 = vmatprep.subr.mxu0 0.0
    %503 = vmatpush1.msra.mxu0 0.0
    %504 = vmatprep.subr.mxu0 0.0
    %505 = vmatpush1.msra.mxu0 0.0
    %506 = vmatprep.subr.mxu0 0.0
    %507 = vmatpush1.msra.mxu0 0.0
    %508 = vmatprep.subr.mxu0 0.0
    %509 = vmatpush1.msra.mxu0 0.0
    %510 = vmatprep.subr.mxu0 0.0
    %511 = vmatpush1.msra.mxu0 0.0
    %512 = vmatprep.subr.mxu0 0.0
    %513 = vmatpush1.msra.mxu0 0.0
    %514 = vmatprep.subr.mxu0 0.0
    %515 = vmatpush1.msra.mxu0 0.0
    %516 = vmatprep.subr.mxu0 0.0
    %517 = vmatpush1.msra.mxu0 0.0
    %518 = vmatprep.subr.mxu0 0.0
    %519 = vmatpush1.msra.mxu0 0.0
    %520 = vmatprep.subr.mxu0 0.0
    %521 = vmatpush1.msra.mxu0 0.0
    %522 = vmatprep.subr.mxu0 0.0
    %523 = vmatpush1.msra.mxu0 0.0
    %524 = vmatprep.subr.mxu0 0.0
    %525 = vmatpush1.msra.mxu0 0.0
    %526 = vmatprep.subr.mxu0 0.0
    %527 = vmatpush1.msra.mxu0 0.0
    %528 = vmatprep.subr.mxu0 0.0
    %529 = vmatpush1.msra.mxu0 0.0
    %530 = vmatprep.subr.mxu0 0.0
    %531 = vmatpush1.msra.mxu0 0.0
    %532 = vmatprep.subr.mxu0 0.0
    %533 = vmatpush1.msra.mxu0 0.0
    %534 = vmatprep.subr.mxu0 0.0
    %535 = vmatpush1.msra.mxu0 0.0
    %536 = vmatprep.subr.mxu0 0.0
    %537 = vmatpush1.msra.mxu0 0.0
    %538 = vmatprep.subr.mxu0 0.0
    %539 = vmatpush1.msra.mxu0 0.0
    %540 = vmatprep.subr.mxu0 0.0
    %541 = vmatpush1.msra.mxu0 0.0
    %542 = vmatprep.subr.mxu0 0.0
    %543 = vmatpush1.msra.mxu0 0.0
    %544 = vmatprep.subr.mxu0 0.0
    %545 = vmatpush1.msra.mxu0 0.0
    %546 = vmatprep.subr.mxu0 0.0
    %547 = vmatpush1.msra.mxu0 0.0
    %548 = vmatprep.subr.mxu0 0.0
    %549 = vmatpush1.msra.mxu0 0.0
    %550 = vmatprep.subr.mxu0 0.0
    %551 = vmatpush1.msra.mxu0 0.0
    %552 = vmatprep.subr.mxu0 0.0
    %553 = vmatpush1.msra.mxu0 0.0
    %554 = vmatprep.subr.mxu0 0.0
    %555 = vmatpush1.msra.mxu0 0.0
    %556 = vmatprep.subr.mxu0 0.0
    %557 = vmatpush1.msra.mxu0 0.0
    %558 = vmatprep.mubr.f32.mxu0 0.0
    %559 = vmatmul.mubr.f32.gmra.mrb[0].mxu0 %v489
    %v560 = vpop.f32.mrb[0].mxu0
    %v561 = vadd.f32 0.0, %v560
    %v562 = vpop.f32.mrb[0].mxu0
    %563 = vmatprep.mubr.f32.mxu0 0.0
    %564 = vmatmul.mubr.f32.gmra.mrb[0].mxu0 %v492
    %v565 = vpop.f32.mrb[0].mxu0
    %v566 = vadd.f32 0.0, %v565
    %v567 = vpop.f32.mrb[0].mxu0
    %568 = vdwg.mxu0
    %v569 = vadd.f32 %v230, %v561
    %v570 = vadd.f32 %v235, %v566
    %v571 = vld [vmem:[%s41] sm:$0x1]
    %v572 = vld [vmem:[%s43] sm:$0x1]
    %v573 = vsel %vm250, %v569, 0.0
    %574 = vadd.xlane.f32.xlu0 %v573
    %v575 = vpop.xlane.xlu0 %574
    %v576 = vsel %vm250, %v570, 0.0
    %577 = vadd.xlane.f32.xlu0 %v576
    %v578 = vpop.xlane.xlu0 %577
    %v579 = vmul.f32 %v575, %v257
    %v580 = vmul.f32 %v578, %v257
    %v581 = vsub.f32 %v569, %v579
    %v582 = vsub.f32 %v570, %v580
    %v583 = vmul.f32 %v581, %v581
    %v584 = vmul.f32 %v582, %v582
    %v585 = vsel %vm250, %v583, 0.0
    %586 = vadd.xlane.f32.xlu0 %v585
    %v587 = vpop.xlane.xlu0 %586
    %v588 = vsel %vm250, %v584, 0.0
    %589 = vadd.xlane.f32.xlu0 %v588
    %v590 = vpop.xlane.xlu0 %589
    %v591 = vmul.f32 %v587, %v257
    %v592 = vmul.f32 %v590, %v257
    %v593 = vadd.f32 %v591, 1e-05
    %v594 = vadd.f32 %v592, 1e-05
    %v595 = vrsqrt.pop %v593
    %v596 = vrsqrt.pop %v594
    %v597 = vmul.f32 %v581, %v595
    %v598 = vmul.f32 %v582, %v596
    %v600 = vlaneseq
    %v601 = vshrl.u32 %v600, 7
    %v602 = vsub.s32 0, %v601
    %v603 = vrot.slane %v571, %v602
    %v605 = vmul.f32 %v597, %v603
    %v606 = vmul.f32 %v598, %v603
    %v608 = vlaneseq
    %v609 = vshrl.u32 %v608, 7
    %v610 = vsub.s32 0, %v609
    %v611 = vrot.slane %v572, %v610
    %v613 = vadd.f32 %v605, %v611
    %v614 = vadd.f32 %v606, %v611
    %v615 = vld [vmem:[%s45] sm:$0xff]
    %v616 = vld [vmem:[%s45 + $0x8] sm:$0xff]
    %v617 = vld [vmem:[%s45 + $0x10] sm:$0xff]
    %v618 = vld [vmem:[%s45 + $0x18] sm:$0xff]
    %v619 = vld [vmem:[%s47] sm:$0x1]
    %v621 = vlaneseq
    %v622 = vshrl.u32 %v621, 7
    %v623 = vsub.s32 0, %v622
    %v624 = vrot.slane %v619, %v623
    %v627 = vsel %vm250, %v613, 0
    %v630 = vsel %vm250, %v614, 0
    %632 = vmatprep.subr.mxu0 0.0
    %633 = vmatpush1.msra.mxu0 %v615
    %634 = vmatprep.subr.mxu0 0.0
    %635 = vmatpush1.msra.mxu0 %v616
    %636 = vmatprep.subr.mxu0 0.0
    %637 = vmatpush1.msra.mxu0 %v617
    %638 = vmatprep.subr.mxu0 0.0
    %639 = vmatpush1.msra.mxu0 %v618
    %640 = vmatprep.subr.mxu0 0.0
    %641 = vmatpush1.msra.mxu0 0.0
    %642 = vmatprep.subr.mxu0 0.0
    %643 = vmatpush1.msra.mxu0 0.0
    %644 = vmatprep.subr.mxu0 0.0
    %645 = vmatpush1.msra.mxu0 0.0
    %646 = vmatprep.subr.mxu0 0.0
    %647 = vmatpush1.msra.mxu0 0.0
    %648 = vmatprep.subr.mxu0 0.0
    %649 = vmatpush1.msra.mxu0 0.0
    %650 = vmatprep.subr.mxu0 0.0
    %651 = vmatpush1.msra.mxu0 0.0
    %652 = vmatprep.subr.mxu0 0.0
    %653 = vmatpush1.msra.mxu0 0.0
    %654 = vmatprep.subr.mxu0 0.0
    %655 = vmatpush1.msra.mxu0 0.0
    %656 = vmatprep.subr.mxu0 0.0
    %657 = vmatpush1.msra.mxu0 0.0
    %658 = vmatprep.subr.mxu0 0.0
    %659 = vmatpush1.msra.mxu0 0.0
    %660 = vmatprep.subr.mxu0 0.0
    %661 = vmatpush1.msra.mxu0 0.0
    %662 = vmatprep.subr.mxu0 0.0
    %663 = vmatpush1.msra.mxu0 0.0
    %664 = vmatprep.subr.mxu0 0.0
    %665 = vmatpush1.msra.mxu0 0.0
    %666 = vmatprep.subr.mxu0 0.0
    %667 = vmatpush1.msra.mxu0 0.0
    %668 = vmatprep.subr.mxu0 0.0
    %669 = vmatpush1.msra.mxu0 0.0
    %670 = vmatprep.subr.mxu0 0.0
    %671 = vmatpush1.msra.mxu0 0.0
    %672 = vmatprep.subr.mxu0 0.0
    %673 = vmatpush1.msra.mxu0 0.0
    %674 = vmatprep.subr.mxu0 0.0
    %675 = vmatpush1.msra.mxu0 0.0
    %676 = vmatprep.subr.mxu0 0.0
    %677 = vmatpush1.msra.mxu0 0.0
    %678 = vmatprep.subr.mxu0 0.0
    %679 = vmatpush1.msra.mxu0 0.0
    %680 = vmatprep.subr.mxu0 0.0
    %681 = vmatpush1.msra.mxu0 0.0
    %682 = vmatprep.subr.mxu0 0.0
    %683 = vmatpush1.msra.mxu0 0.0
    %684 = vmatprep.subr.mxu0 0.0
    %685 = vmatpush1.msra.mxu0 0.0
    %686 = vmatprep.subr.mxu0 0.0
    %687 = vmatpush1.msra.mxu0 0.0
    %688 = vmatprep.subr.mxu0 0.0
    %689 = vmatpush1.msra.mxu0 0.0
    %690 = vmatprep.subr.mxu0 0.0
    %691 = vmatpush1.msra.mxu0 0.0
    %692 = vmatprep.subr.mxu0 0.0
    %693 = vmatpush1.msra.mxu0 0.0
    %694 = vmatprep.subr.mxu0 0.0
    %695 = vmatpush1.msra.mxu0 0.0
    %696 = vmatprep.mubr.f32.mxu0 0.0
    %697 = vmatmul.mubr.f32.gmra.mrb[0].mxu0 %v627
    %v698 = vpop.f32.mrb[0].mxu0
    %v699 = vadd.f32 %v624, %v698
    %v700 = vpop.f32.mrb[0].mxu0
    %701 = vmatprep.mubr.f32.mxu0 0.0
    %702 = vmatmul.mubr.f32.gmra.mrb[0].mxu0 %v630
    %v703 = vpop.f32.mrb[0].mxu0
    %v704 = vadd.f32 %v624, %v703
    %v705 = vpop.f32.mrb[0].mxu0
    %706 = vdwg.mxu0
    %v707 = vmul.f32 %v699, 0.5
    %v708 = vmul.f32 %v704, 0.5
    %v709 = vmul.f32 %v699, 0.70710677
    %v710 = vmul.f32 %v704, 0.70710677
    %v711 = verf.f32.pop %v709
    %v712 = verf.f32.pop %v710
    %v713 = vadd.f32 %v711, 1.0
    %v714 = vadd.f32 %v712, 1.0
    %v715 = vmul.f32 %v707, %v713
    %v716 = vmul.f32 %v708, %v714
    %v717 = vld [vmem:[%s49] sm:$0xff]
    %v718 = vld [vmem:[%s49 + $0x8] sm:$0xff]
    %v719 = vld [vmem:[%s49 + $0x10] sm:$0xff]
    %v720 = vld [vmem:[%s49 + $0x18] sm:$0xff]
    %v721 = vld [vmem:[%s49 + $0x20] sm:$0xff]
    %v722 = vld [vmem:[%s49 + $0x28] sm:$0xff]
    %v723 = vld [vmem:[%s49 + $0x30] sm:$0xff]
    %v724 = vld [vmem:[%s49 + $0x38] sm:$0xff]
    %vm725 = vcmask 523264
    %v727 = vsel %vm725, %v715, 0
    %v730 = vsel %vm725, %v716, 0
    %732 = vmatprep.subr.mxu0 0.0
    %733 = vmatpush1.msra.mxu0 %v717
    %734 = vmatprep.subr.mxu0 0.0
    %735 = vmatpush1.msra.mxu0 %v718
    %736 = vmatprep.subr.mxu0 0.0
    %737 = vmatpush1.msra.mxu0 %v719
    %738 = vmatprep.subr.mxu0 0.0
    %739 = vmatpush1.msra.mxu0 %v720
    %740 = vmatprep.subr.mxu0 0.0
    %741 = vmatpush1.msra.mxu0 %v721
    %742 = vmatprep.subr.mxu0 0.0
    %743 = vmatpush1.msra.mxu0 %v722
    %744 = vmatprep.subr.mxu0 0.0
    %745 = vmatpush1.msra.mxu0 %v723
    %746 = vmatprep.subr.mxu0 0.0
    %747 = vmatpush1.msra.mxu0 %v724
    %748 = vmatprep.subr.mxu0 0.0
    %749 = vmatpush1.msra.mxu0 0.0
    %750 = vmatprep.subr.mxu0 0.0
    %751 = vmatpush1.msra.mxu0 0.0
    %752 = vmatprep.subr.mxu0 0.0
    %753 = vmatpush1.msra.mxu0 0.0
    %754 = vmatprep.subr.mxu0 0.0
    %755 = vmatpush1.msra.mxu0 0.0
    %756 = vmatprep.subr.mxu0 0.0
    %757 = vmatpush1.msra.mxu0 0.0
    %758 = vmatprep.subr.mxu0 0.0
    %759 = vmatpush1.msra.mxu0 0.0
    %760 = vmatprep.subr.mxu0 0.0
    %761 = vmatpush1.msra.mxu0 0.0
    %762 = vmatprep.subr.mxu0 0.0
    %763 = vmatpush1.msra.mxu0 0.0
    %764 = vmatprep.subr.mxu0 0.0
    %765 = vmatpush1.msra.mxu0 0.0
    %766 = vmatprep.subr.mxu0 0.0
    %767 = vmatpush1.msra.mxu0 0.0
    %768 = vmatprep.subr.mxu0 0.0
    %769 = vmatpush1.msra.mxu0 0.0
    %770 = vmatprep.subr.mxu0 0.0
    %771 = vmatpush1.msra.mxu0 0.0
    %772 = vmatprep.subr.mxu0 0.0
    %773 = vmatpush1.msra.mxu0 0.0
    %774 = vmatprep.subr.mxu0 0.0
    %775 = vmatpush1.msra.mxu0 0.0
    %776 = vmatprep.subr.mxu0 0.0
    %777 = vmatpush1.msra.mxu0 0.0
    %778 = vmatprep.subr.mxu0 0.0
    %779 = vmatpush1.msra.mxu0 0.0
    %780 = vmatprep.subr.mxu0 0.0
    %781 = vmatpush1.msra.mxu0 0.0
    %782 = vmatprep.subr.mxu0 0.0
    %783 = vmatpush1.msra.mxu0 0.0
    %784 = vmatprep.subr.mxu0 0.0
    %785 = vmatpush1.msra.mxu0 0.0
    %786 = vmatprep.subr.mxu0 0.0
    %787 = vmatpush1.msra.mxu0 0.0
    %788 = vmatprep.subr.mxu0 0.0
    %789 = vmatpush1.msra.mxu0 0.0
    %790 = vmatprep.subr.mxu0 0.0
    %791 = vmatpush1.msra.mxu0 0.0
    %792 = vmatprep.subr.mxu0 0.0
    %793 = vmatpush1.msra.mxu0 0.0
    %794 = vmatprep.subr.mxu0 0.0
    %795 = vmatpush1.msra.mxu0 0.0
    %796 = vmatprep.mubr.f32.mxu0 0.0
    %797 = vmatmul.mubr.f32.gmra.mrb[0].mxu0 %v727
    %v798 = vpop.f32.mrb[0].mxu0
    %v799 = vadd.f32 0.0, %v798
    %v800 = vpop.f32.mrb[0].mxu0
    %801 = vmatprep.mubr.f32.mxu0 0.0
    %802 = vmatmul.mubr.f32.gmra.mrb[0].mxu0 %v730
    %v803 = vpop.f32.mrb[0].mxu0
    %v804 = vadd.f32 0.0, %v803
    %v805 = vpop.f32.mrb[0].mxu0
    %806 = vdwg.mxu0
    %v807 = vadd.f32 %v569, %v799
    %v808 = vadd.f32 %v570, %v804
    %v809 = vld [vmem:[%s51] sm:$0x1]
    %v811 = vlaneseq
    %v812 = vshrl.u32 %v811, 7
    %v813 = vsub.s32 0, %v812
    %v814 = vrot.slane %v809, %v813
    %v816 = vadd.f32 %v807, %v814
    %v817 = vadd.f32 %v808, %v814
    %v818 = vld [vmem:[%s53] sm:$0x1]
    %v819 = vld [vmem:[%s55] sm:$0x1]
    %v820 = vsel %vm250, %v816, 0.0
    %821 = vadd.xlane.f32.xlu0 %v820
    %v822 = vpop.xlane.xlu0 %821
    %v823 = vsel %vm250, %v817, 0.0
    %824 = vadd.xlane.f32.xlu0 %v823
    %v825 = vpop.xlane.xlu0 %824
    %v826 = vmul.f32 %v822, %v257
    %v827 = vmul.f32 %v825, %v257
    %v828 = vsub.f32 %v816, %v826
    %v829 = vsub.f32 %v817, %v827
    %v830 = vmul.f32 %v828, %v828
    %v831 = vmul.f32 %v829, %v829
    %v832 = vsel %vm250, %v830, 0.0
    %833 = vadd.xlane.f32.xlu0 %v832
    %v834 = vpop.xlane.xlu0 %833
    %v835 = vsel %vm250, %v831, 0.0
    %836 = vadd.xlane.f32.xlu0 %v835
    %v837 = vpop.xlane.xlu0 %836
    %v838 = vmul.f32 %v834, %v257
    %v839 = vmul.f32 %v837, %v257
    %v840 = vadd.f32 %v838, 1e-05
    %v841 = vadd.f32 %v839, 1e-05
    %v842 = vrsqrt.pop %v840
    %v843 = vrsqrt.pop %v841
    %v844 = vmul.f32 %v828, %v842
    %v845 = vmul.f32 %v829, %v843
    %v847 = vlaneseq
    %v848 = vshrl.u32 %v847, 7
    %v849 = vsub.s32 0, %v848
    %v850 = vrot.slane %v818, %v849
    %v852 = vmul.f32 %v844, %v850
    %v853 = vmul.f32 %v845, %v850
    %v855 = vlaneseq
    %v856 = vshrl.u32 %v855, 7
    %v857 = vsub.s32 0, %v856
    %v858 = vrot.slane %v819, %v857
    %v860 = vadd.f32 %v852, %v858
    %v861 = vadd.f32 %v853, %v858
    %v862 = vmul.f32 %v860, %v238
    %v863 = vmul.f32 %v861, %v239
    %v865 = vsel %vm250, %v860, 0
    %v868 = vsel %vm250, %v861, 0
    %870 = vmatprep.subr.mxu0 0.0
    %871 = vmatpush1.msra.mxu0 %v242
    %872 = vmatprep.subr.mxu0 0.0
    %873 = vmatpush1.msra.mxu0 %v243
    %874 = vmatprep.subr.mxu0 0.0
    %875 = vmatpush1.msra.mxu0 %v244
    %876 = vmatprep.subr.mxu0 0.0
    %877 = vmatpush1.msra.mxu0 %v245
    %878 = vmatprep.subr.mxu0 0.0
    %879 = vmatpush1.msra.mxu0 0.0
    %880 = vmatprep.subr.mxu0 0.0
    %881 = vmatpush1.msra.mxu0 0.0
    %882 = vmatprep.subr.mxu0 0.0
    %883 = vmatpush1.msra.mxu0 0.0
    %884 = vmatprep.subr.mxu0 0.0
    %885 = vmatpush1.msra.mxu0 0.0
    %886 = vmatprep.subr.mxu0 0.0
    %887 = vmatpush1.msra.mxu0 0.0
    %888 = vmatprep.subr.mxu0 0.0
    %889 = vmatpush1.msra.mxu0 0.0
    %890 = vmatprep.subr.mxu0 0.0
    %891 = vmatpush1.msra.mxu0 0.0
    %892 = vmatprep.subr.mxu0 0.0
    %893 = vmatpush1.msra.mxu0 0.0
    %894 = vmatprep.subr.mxu0 0.0
    %895 = vmatpush1.msra.mxu0 0.0
    %896 = vmatprep.subr.mxu0 0.0
    %897 = vmatpush1.msra.mxu0 0.0
    %898 = vmatprep.subr.mxu0 0.0
    %899 = vmatpush1.msra.mxu0 0.0
    %900 = vmatprep.subr.mxu0 0.0
    %901 = vmatpush1.msra.mxu0 0.0
    %902 = vmatprep.subr.mxu0 0.0
    %903 = vmatpush1.msra.mxu0 0.0
    %904 = vmatprep.subr.mxu0 0.0
    %905 = vmatpush1.msra.mxu0 0.0
    %906 = vmatprep.subr.mxu0 0.0
    %907 = vmatpush1.msra.mxu0 0.0
    %908 = vmatprep.subr.mxu0 0.0
    %909 = vmatpush1.msra.mxu0 0.0
    %910 = vmatprep.subr.mxu0 0.0
    %911 = vmatpush1.msra.mxu0 0.0
    %912 = vmatprep.subr.mxu0 0.0
    %913 = vmatpush1.msra.mxu0 0.0
    %914 = vmatprep.subr.mxu0 0.0
    %915 = vmatpush1.msra.mxu0 0.0
    %916 = vmatprep.subr.mxu0 0.0
    %917 = vmatpush1.msra.mxu0 0.0
    %918 = vmatprep.subr.mxu0 0.0
    %919 = vmatpush1.msra.mxu0 0.0
    %920 = vmatprep.subr.mxu0 0.0
    %921 = vmatpush1.msra.mxu0 0.0
    %922 = vmatprep.subr.mxu0 0.0
    %923 = vmatpush1.msra.mxu0 0.0
    %924 = vmatprep.subr.mxu0 0.0
    %925 = vmatpush1.msra.mxu0 0.0
    %926 = vmatprep.subr.mxu0 0.0
    %927 = vmatpush1.msra.mxu0 0.0
    %928 = vmatprep.subr.mxu0 0.0
    %929 = vmatpush1.msra.mxu0 0.0
    %930 = vmatprep.subr.mxu0 0.0
    %931 = vmatpush1.msra.mxu0 0.0
    %932 = vmatprep.subr.mxu0 0.0
    %933 = vmatpush1.msra.mxu0 0.0
    %934 = vmatprep.mubr.f32.mxu0 0.0
    %935 = vmatmul.mubr.f32.gmra.mrb[0].mxu0 %v865
    %v936 = vpop.f32.mrb[0].mxu0
    %v937 = vadd.f32 0.0, %v936
    %v938 = vpop.f32.mrb[0].mxu0
    %939 = vmatprep.mubr.f32.mxu0 0.0
    %940 = vmatmul.mubr.f32.gmra.mrb[0].mxu0 %v868
    %v941 = vpop.f32.mrb[0].mxu0
    %v942 = vadd.f32 0.0, %v941
    %v943 = vpop.f32.mrb[0].mxu0
    %944 = vdwg.mxu0
    %v945 = vmul.f32 %v937, %v240
    %v946 = vmul.f32 %v942, %v241
    %v947 = vadd.f32 %v862, %v945
    %v948 = vadd.f32 %v863, %v946
    %v950 = vsel %vm250, %v947, 0
    %v953 = vsel %vm250, %v948, 0
    %955 = vmatprep.subr.mxu0 0.0
    %956 = vmatpush1.xpose.msra.mxu0 %v950
    %957 = vmatprep.subr.mxu0 0.0
    %958 = vmatpush1.xpose.msra.mxu0 %v953
    %959 = vmatprep.subr.mxu0 0.0
    %960 = vmatpush1.xpose.msra.mxu0 0.0
    %961 = vmatprep.subr.mxu0 0.0
    %962 = vmatpush1.xpose.msra.mxu0 0.0
    %963 = vmatprep.subr.mxu0 0.0
    %964 = vmatpush1.xpose.msra.mxu0 0.0
    %965 = vmatprep.subr.mxu0 0.0
    %966 = vmatpush1.xpose.msra.mxu0 0.0
    %967 = vmatprep.subr.mxu0 0.0
    %968 = vmatpush1.xpose.msra.mxu0 0.0
    %969 = vmatprep.subr.mxu0 0.0
    %970 = vmatpush1.xpose.msra.mxu0 0.0
    %971 = vmatprep.subr.mxu0 0.0
    %972 = vmatpush1.xpose.msra.mxu0 0.0
    %973 = vmatprep.subr.mxu0 0.0
    %974 = vmatpush1.xpose.msra.mxu0 0.0
    %975 = vmatprep.subr.mxu0 0.0
    %976 = vmatpush1.xpose.msra.mxu0 0.0
    %977 = vmatprep.subr.mxu0 0.0
    %978 = vmatpush1.xpose.msra.mxu0 0.0
    %979 = vmatprep.subr.mxu0 0.0
    %980 = vmatpush1.xpose.msra.mxu0 0.0
    %981 = vmatprep.subr.mxu0 0.0
    %982 = vmatpush1.xpose.msra.mxu0 0.0
    %983 = vmatprep.subr.mxu0 0.0
    %984 = vmatpush1.xpose.msra.mxu0 0.0
    %985 = vmatprep.subr.mxu0 0.0
    %986 = vmatpush1.xpose.msra.mxu0 0.0
    %987 = vmatprep.subr.mxu0 0.0
    %988 = vmatpush1.xpose.msra.mxu0 0.0
    %989 = vmatprep.subr.mxu0 0.0
    %990 = vmatpush1.xpose.msra.mxu0 0.0
    %991 = vmatprep.subr.mxu0 0.0
    %992 = vmatpush1.xpose.msra.mxu0 0.0
    %993 = vmatprep.subr.mxu0 0.0
    %994 = vmatpush1.xpose.msra.mxu0 0.0
    %995 = vmatprep.subr.mxu0 0.0
    %996 = vmatpush1.xpose.msra.mxu0 0.0
    %997 = vmatprep.subr.mxu0 0.0
    %998 = vmatpush1.xpose.msra.mxu0 0.0
    %999 = vmatprep.subr.mxu0 0.0
    %1000 = vmatpush1.xpose.msra.mxu0 0.0
    %1001 = vmatprep.subr.mxu0 0.0
    %1002 = vmatpush1.xpose.msra.mxu0 0.0
    %1003 = vmatprep.subr.mxu0 0.0
    %1004 = vmatpush1.xpose.msra.mxu0 0.0
    %1005 = vmatprep.subr.mxu0 0.0
    %1006 = vmatpush1.xpose.msra.mxu0 0.0
    %1007 = vmatprep.subr.mxu0 0.0
    %1008 = vmatpush1.xpose.msra.mxu0 0.0
    %1009 = vmatprep.subr.mxu0 0.0
    %1010 = vmatpush1.xpose.msra.mxu0 0.0
    %1011 = vmatprep.subr.mxu0 0.0
    %1012 = vmatpush1.xpose.msra.mxu0 0.0
    %1013 = vmatprep.subr.mxu0 0.0
    %1014 = vmatpush1.xpose.msra.mxu0 0.0
    %1015 = vmatprep.subr.mxu0 0.0
    %1016 = vmatpush1.xpose.msra.mxu0 0.0
    %1017 = vmatprep.subr.mxu0 0.0
    %1018 = vmatpush1.xpose.msra.mxu0 0.0
    %1019 = vmatprep.mubr.f32.mxu0 0.0
    %1020 = vmatmul.mubr.f32.gmra.mrb[0].mxu0 %v950
    %v1021 = vpop.f32.mrb[0].mxu0
    %v1022 = vadd.f32 0.0, %v1021
    %v1023 = vpop.f32.mrb[0].mxu0
    %1024 = vmatprep.mubr.f32.mxu0 0.0
    %1025 = vmatmul.mubr.f32.gmra.mrb[0].mxu0 %v953
    %v1026 = vpop.f32.mrb[0].mxu0
    %v1027 = vadd.f32 0.0, %v1026
    %v1028 = vpop.f32.mrb[0].mxu0
    %1029 = vdwg.mxu0
    %v1030 = vmul.f32 %v1022, 0.17677669
    %v1031 = vmul.f32 %v1027, 0.17677669
    %v1032 = vadd.f32 %v1030, %v246
    %v1033 = vadd.f32 %v1031, %v247
    %v1034 = vsel %vm156, %v1032, -inf
    %1035 = vmax.xlane.f32.xlu0 %v1034
    %v1036 = vpop.xlane.xlu0 %1035
    %v1037 = vsel %vm156, %v1033, -inf
    %1038 = vmax.xlane.f32.xlu0 %v1037
    %v1039 = vpop.xlane.xlu0 %1038
    %v1040 = vsub.f32 %v1032, %v1036
    %v1041 = vsub.f32 %v1033, %v1039
    %v1042 = vmul.f32 %v1040, 1.442695
    %v1043 = vpow.pop %v1042
    %v1044 = vmul.f32 %v1041, 1.442695
    %v1045 = vpow.pop %v1044
    %v1046 = vsel %vm156, %v1043, 0.0
    %1047 = vadd.xlane.f32.xlu0 %v1046
    %v1048 = vpop.xlane.xlu0 %1047
    %v1049 = vsel %vm156, %v1045, 0.0
    %1050 = vadd.xlane.f32.xlu0 %v1049
    %v1051 = vpop.xlane.xlu0 %1050
    %v1052 = vrcp.pop %v1048
    %v1053 = vrcp.pop %v1051
    %v1054 = vmul.f32 %v1043, %v1052
    %v1055 = vmul.f32 %v1045, %v1053
    %v1057 = vsel %vm156, %v1054, 0
    %v1060 = vsel %vm156, %v1055, 0
    %1062 = vmatprep.subr.mxu0 0.0
    %1063 = vmatpush1.msra.mxu0 %v860
    %1064 = vmatprep.subr.mxu0 0.0
    %1065 = vmatpush1.msra.mxu0 %v861
    %1066 = vmatprep.subr.mxu0 0.0
    %1067 = vmatpush1.msra.mxu0 0.0
    %1068 = vmatprep.subr.mxu0 0.0
    %1069 = vmatpush1.msra.mxu0 0.0
    %1070 = vmatprep.subr.mxu0 0.0
    %1071 = vmatpush1.msra.mxu0 0.0
    %1072 = vmatprep.subr.mxu0 0.0
    %1073 = vmatpush1.msra.mxu0 0.0
    %1074 = vmatprep.subr.mxu0 0.0
    %1075 = vmatpush1.msra.mxu0 0.0
    %1076 = vmatprep.subr.mxu0 0.0
    %1077 = vmatpush1.msra.mxu0 0.0
    %1078 = vmatprep.subr.mxu0 0.0
    %1079 = vmatpush1.msra.mxu0 0.0
    %1080 = vmatprep.subr.mxu0 0.0
    %1081 = vmatpush1.msra.mxu0 0.0
    %1082 = vmatprep.subr.mxu0 0.0
    %1083 = vmatpush1.msra.mxu0 0.0
    %1084 = vmatprep.subr.mxu0 0.0
    %1085 = vmatpush1.msra.mxu0 0.0
    %1086 = vmatprep.subr.mxu0 0.0
    %1087 = vmatpush1.msra.mxu0 0.0
    %1088 = vmatprep.subr.mxu0 0.0
    %1089 = vmatpush1.msra.mxu0 0.0
    %1090 = vmatprep.subr.mxu0 0.0
    %1091 = vmatpush1.msra.mxu0 0.0
    %1092 = vmatprep.subr.mxu0 0.0
    %1093 = vmatpush1.msra.mxu0 0.0
    %1094 = vmatprep.subr.mxu0 0.0
    %1095 = vmatpush1.msra.mxu0 0.0
    %1096 = vmatprep.subr.mxu0 0.0
    %1097 = vmatpush1.msra.mxu0 0.0
    %1098 = vmatprep.subr.mxu0 0.0
    %1099 = vmatpush1.msra.mxu0 0.0
    %1100 = vmatprep.subr.mxu0 0.0
    %1101 = vmatpush1.msra.mxu0 0.0
    %1102 = vmatprep.subr.mxu0 0.0
    %1103 = vmatpush1.msra.mxu0 0.0
    %1104 = vmatprep.subr.mxu0 0.0
    %1105 = vmatpush1.msra.mxu0 0.0
    %1106 = vmatprep.subr.mxu0 0.0
    %1107 = vmatpush1.msra.mxu0 0.0
    %1108 = vmatprep.subr.mxu0 0.0
    %1109 = vmatpush1.msra.mxu0 0.0
    %1110 = vmatprep.subr.mxu0 0.0
    %1111 = vmatpush1.msra.mxu0 0.0
    %1112 = vmatprep.subr.mxu0 0.0
    %1113 = vmatpush1.msra.mxu0 0.0
    %1114 = vmatprep.subr.mxu0 0.0
    %1115 = vmatpush1.msra.mxu0 0.0
    %1116 = vmatprep.subr.mxu0 0.0
    %1117 = vmatpush1.msra.mxu0 0.0
    %1118 = vmatprep.subr.mxu0 0.0
    %1119 = vmatpush1.msra.mxu0 0.0
    %1120 = vmatprep.subr.mxu0 0.0
    %1121 = vmatpush1.msra.mxu0 0.0
    %1122 = vmatprep.subr.mxu0 0.0
    %1123 = vmatpush1.msra.mxu0 0.0
    %1124 = vmatprep.subr.mxu0 0.0
    %1125 = vmatpush1.msra.mxu0 0.0
    %1126 = vmatprep.mubr.f32.mxu0 0.0
    %1127 = vmatmul.mubr.f32.gmra.mrb[0].mxu0 %v1057
    %v1128 = vpop.f32.mrb[0].mxu0
    %v1129 = vadd.f32 0.0, %v1128
    %v1130 = vpop.f32.mrb[0].mxu0
    %1131 = vmatprep.mubr.f32.mxu0 0.0
    %1132 = vmatmul.mubr.f32.gmra.mrb[0].mxu0 %v1060
    %v1133 = vpop.f32.mrb[0].mxu0
    %v1134 = vadd.f32 0.0, %v1133
    %v1135 = vpop.f32.mrb[0].mxu0
    %1136 = vdwg.mxu0
    %v1137 = vadd.f32 %v816, %v1129
    %v1138 = vadd.f32 %v817, %v1134
    %v1139 = vld [vmem:[%s57] sm:$0x1]
    %v1140 = vld [vmem:[%s59] sm:$0x1]
    %v1141 = vsel %vm250, %v1137, 0.0
    %1142 = vadd.xlane.f32.xlu0 %v1141
    %v1143 = vpop.xlane.xlu0 %1142
    %v1144 = vsel %vm250, %v1138, 0.0
    %1145 = vadd.xlane.f32.xlu0 %v1144
    %v1146 = vpop.xlane.xlu0 %1145
    %v1147 = vmul.f32 %v1143, %v257
    %v1148 = vmul.f32 %v1146, %v257
    %v1149 = vsub.f32 %v1137, %v1147
    %v1150 = vsub.f32 %v1138, %v1148
    %v1151 = vmul.f32 %v1149, %v1149
    %v1152 = vmul.f32 %v1150, %v1150
    %v1153 = vsel %vm250, %v1151, 0.0
    %1154 = vadd.xlane.f32.xlu0 %v1153
    %v1155 = vpop.xlane.xlu0 %1154
    %v1156 = vsel %vm250, %v1152, 0.0
    %1157 = vadd.xlane.f32.xlu0 %v1156
    %v1158 = vpop.xlane.xlu0 %1157
    %v1159 = vmul.f32 %v1155, %v257
    %v1160 = vmul.f32 %v1158, %v257
    %v1161 = vadd.f32 %v1159, 1e-05
    %v1162 = vadd.f32 %v1160, 1e-05
    %v1163 = vrsqrt.pop %v1161
    %v1164 = vrsqrt.pop %v1162
    %v1165 = vmul.f32 %v1149, %v1163
    %v1166 = vmul.f32 %v1150, %v1164
    %v1168 = vlaneseq
    %v1169 = vshrl.u32 %v1168, 7
    %v1170 = vsub.s32 0, %v1169
    %v1171 = vrot.slane %v1139, %v1170
    %v1173 = vmul.f32 %v1165, %v1171
    %v1174 = vmul.f32 %v1166, %v1171
    %v1176 = vlaneseq
    %v1177 = vshrl.u32 %v1176, 7
    %v1178 = vsub.s32 0, %v1177
    %v1179 = vrot.slane %v1140, %v1178
    %v1181 = vadd.f32 %v1173, %v1179
    %v1182 = vadd.f32 %v1174, %v1179
    %v1183 = vld [vmem:[%s61] sm:$0xff]
    %v1184 = vld [vmem:[%s61 + $0x8] sm:$0xff]
    %v1185 = vld [vmem:[%s61 + $0x10] sm:$0xff]
    %v1186 = vld [vmem:[%s61 + $0x18] sm:$0xff]
    %v1187 = vld [vmem:[%s63] sm:$0x1]
    %v1189 = vlaneseq
    %v1190 = vshrl.u32 %v1189, 7
    %v1191 = vsub.s32 0, %v1190
    %v1192 = vrot.slane %v1187, %v1191
    %v1195 = vsel %vm250, %v1181, 0
    %v1198 = vsel %vm250, %v1182, 0
    %1200 = vmatprep.subr.mxu0 0.0
    %1201 = vmatpush1.msra.mxu0 %v1183
    %1202 = vmatprep.subr.mxu0 0.0
    %1203 = vmatpush1.msra.mxu0 %v1184
    %1204 = vmatprep.subr.mxu0 0.0
    %1205 = vmatpush1.msra.mxu0 %v1185
    %1206 = vmatprep.subr.mxu0 0.0
    %1207 = vmatpush1.msra.mxu0 %v1186
    %1208 = vmatprep.subr.mxu0 0.0
    %1209 = vmatpush1.msra.mxu0 0.0
    %1210 = vmatprep.subr.mxu0 0.0
    %1211 = vmatpush1.msra.mxu0 0.0
    %1212 = vmatprep.subr.mxu0 0.0
    %1213 = vmatpush1.msra.mxu0 0.0
    %1214 = vmatprep.subr.mxu0 0.0
    %1215 = vmatpush1.msra.mxu0 0.0
    %1216 = vmatprep.subr.mxu0 0.0
    %1217 = vmatpush1.msra.mxu0 0.0
    %1218 = vmatprep.subr.mxu0 0.0
    %1219 = vmatpush1.msra.mxu0 0.0
    %1220 = vmatprep.subr.mxu0 0.0
    %1221 = vmatpush1.msra.mxu0 0.0
    %1222 = vmatprep.subr.mxu0 0.0
    %1223 = vmatpush1.msra.mxu0 0.0
    %1224 = vmatprep.subr.mxu0 0.0
    %1225 = vmatpush1.msra.mxu0 0.0
    %1226 = vmatprep.subr.mxu0 0.0
    %1227 = vmatpush1.msra.mxu0 0.0
    %1228 = vmatprep.subr.mxu0 0.0
    %1229 = vmatpush1.msra.mxu0 0.0
    %1230 = vmatprep.subr.mxu0 0.0
    %1231 = vmatpush1.msra.mxu0 0.0
    %1232 = vmatprep.subr.mxu0 0.0
    %1233 = vmatpush1.msra.mxu0 0.0
    %1234 = vmatprep.subr.mxu0 0.0
    %1235 = vmatpush1.msra.mxu0 0.0
    %1236 = vmatprep.subr.mxu0 0.0
    %1237 = vmatpush1.msra.mxu0 0.0
    %1238 = vmatprep.subr.mxu0 0.0
    %1239 = vmatpush1.msra.mxu0 0.0
    %1240 = vmatprep.subr.mxu0 0.0
    %1241 = vmatpush1.msra.mxu0 0.0
    %1242 = vmatprep.subr.mxu0 0.0
    %1243 = vmatpush1.msra.mxu0 0.0
    %1244 = vmatprep.subr.mxu0 0.0
    %1245 = vmatpush1.msra.mxu0 0.0
    %1246 = vmatprep.subr.mxu0 0.0
    %1247 = vmatpush1.msra.mxu0 0.0
    %1248 = vmatprep.subr.mxu0 0.0
    %1249 = vmatpush1.msra.mxu0 0.0
    %1250 = vmatprep.subr.mxu0 0.0
    %1251 = vmatpush1.msra.mxu0 0.0
    %1252 = vmatprep.subr.mxu0 0.0
    %1253 = vmatpush1.msra.mxu0 0.0
    %1254 = vmatprep.subr.mxu0 0.0
    %1255 = vmatpush1.msra.mxu0 0.0
    %1256 = vmatprep.subr.mxu0 0.0
    %1257 = vmatpush1.msra.mxu0 0.0
    %1258 = vmatprep.subr.mxu0 0.0
    %1259 = vmatpush1.msra.mxu0 0.0
    %1260 = vmatprep.subr.mxu0 0.0
    %1261 = vmatpush1.msra.mxu0 0.0
    %1262 = vmatprep.subr.mxu0 0.0
    %1263 = vmatpush1.msra.mxu0 0.0
    %1264 = vmatprep.mubr.f32.mxu0 0.0
    %1265 = vmatmul.mubr.f32.gmra.mrb[0].mxu0 %v1195
    %v1266 = vpop.f32.mrb[0].mxu0
    %v1267 = vadd.f32 %v1192, %v1266
    %v1268 = vpop.f32.mrb[0].mxu0
    %1269 = vmatprep.mubr.f32.mxu0 0.0
    %1270 = vmatmul.mubr.f32.gmra.mrb[0].mxu0 %v1198
    %v1271 = vpop.f32.mrb[0].mxu0
    %v1272 = vadd.f32 %v1192, %v1271
    %v1273 = vpop.f32.mrb[0].mxu0
    %1274 = vdwg.mxu0
    %v1275 = vmul.f32 %v1267, 0.5
    %v1276 = vmul.f32 %v1272, 0.5
    %v1277 = vmul.f32 %v1267, 0.70710677
    %v1278 = vmul.f32 %v1272, 0.70710677
    %v1279 = verf.f32.pop %v1277
    %v1280 = verf.f32.pop %v1278
    %v1281 = vadd.f32 %v1279, 1.0
    %v1282 = vadd.f32 %v1280, 1.0
    %v1283 = vmul.f32 %v1275, %v1281
    %v1284 = vmul.f32 %v1276, %v1282
    %v1285 = vld [vmem:[%s65] sm:$0xff]
    %v1286 = vld [vmem:[%s65 + $0x8] sm:$0xff]
    %v1287 = vld [vmem:[%s65 + $0x10] sm:$0xff]
    %v1288 = vld [vmem:[%s65 + $0x18] sm:$0xff]
    %v1289 = vld [vmem:[%s65 + $0x20] sm:$0xff]
    %v1290 = vld [vmem:[%s65 + $0x28] sm:$0xff]
    %v1291 = vld [vmem:[%s65 + $0x30] sm:$0xff]
    %v1292 = vld [vmem:[%s65 + $0x38] sm:$0xff]
    %v1294 = vsel %vm725, %v1283, 0
    %v1297 = vsel %vm725, %v1284, 0
    %1299 = vmatprep.subr.mxu0 0.0
    %1300 = vmatpush1.msra.mxu0 %v1285
    %1301 = vmatprep.subr.mxu0 0.0
    %1302 = vmatpush1.msra.mxu0 %v1286
    %1303 = vmatprep.subr.mxu0 0.0
    %1304 = vmatpush1.msra.mxu0 %v1287
    %1305 = vmatprep.subr.mxu0 0.0
    %1306 = vmatpush1.msra.mxu0 %v1288
    %1307 = vmatprep.subr.mxu0 0.0
    %1308 = vmatpush1.msra.mxu0 %v1289
    %1309 = vmatprep.subr.mxu0 0.0
    %1310 = vmatpush1.msra.mxu0 %v1290
    %1311 = vmatprep.subr.mxu0 0.0
    %1312 = vmatpush1.msra.mxu0 %v1291
    %1313 = vmatprep.subr.mxu0 0.0
    %1314 = vmatpush1.msra.mxu0 %v1292
    %1315 = vmatprep.subr.mxu0 0.0
    %1316 = vmatpush1.msra.mxu0 0.0
    %1317 = vmatprep.subr.mxu0 0.0
    %1318 = vmatpush1.msra.mxu0 0.0
    %1319 = vmatprep.subr.mxu0 0.0
    %1320 = vmatpush1.msra.mxu0 0.0
    %1321 = vmatprep.subr.mxu0 0.0
    %1322 = vmatpush1.msra.mxu0 0.0
    %1323 = vmatprep.subr.mxu0 0.0
    %1324 = vmatpush1.msra.mxu0 0.0
    %1325 = vmatprep.subr.mxu0 0.0
    %1326 = vmatpush1.msra.mxu0 0.0
    %1327 = vmatprep.subr.mxu0 0.0
    %1328 = vmatpush1.msra.mxu0 0.0
    %1329 = vmatprep.subr.mxu0 0.0
    %1330 = vmatpush1.msra.mxu0 0.0
    %1331 = vmatprep.subr.mxu0 0.0
    %1332 = vmatpush1.msra.mxu0 0.0
    %1333 = vmatprep.subr.mxu0 0.0
    %1334 = vmatpush1.msra.mxu0 0.0
    %1335 = vmatprep.subr.mxu0 0.0
    %1336 = vmatpush1.msra.mxu0 0.0
    %1337 = vmatprep.subr.mxu0 0.0
    %1338 = vmatpush1.msra.mxu0 0.0
    %1339 = vmatprep.subr.mxu0 0.0
    %1340 = vmatpush1.msra.mxu0 0.0
    %1341 = vmatprep.subr.mxu0 0.0
    %1342 = vmatpush1.msra.mxu0 0.0
    %1343 = vmatprep.subr.mxu0 0.0
    %1344 = vmatpush1.msra.mxu0 0.0
    %1345 = vmatprep.subr.mxu0 0.0
    %1346 = vmatpush1.msra.mxu0 0.0
    %1347 = vmatprep.subr.mxu0 0.0
    %1348 = vmatpush1.msra.mxu0 0.0
    %1349 = vmatprep.subr.mxu0 0.0
    %1350 = vmatpush1.msra.mxu0 0.0
    %1351 = vmatprep.subr.mxu0 0.0
    %1352 = vmatpush1.msra.mxu0 0.0
    %1353 = vmatprep.subr.mxu0 0.0
    %1354 = vmatpush1.msra.mxu0 0.0
    %1355 = vmatprep.subr.mxu0 0.0
    %1356 = vmatpush1.msra.mxu0 0.0
    %1357 = vmatprep.subr.mxu0 0.0
    %1358 = vmatpush1.msra.mxu0 0.0
    %1359 = vmatprep.subr.mxu0 0.0
    %1360 = vmatpush1.msra.mxu0 0.0
    %1361 = vmatprep.subr.mxu0 0.0
    %1362 = vmatpush1.msra.mxu0 0.0
    %1363 = vmatprep.mubr.f32.mxu0 0.0
    %1364 = vmatmul.mubr.f32.gmra.mrb[0].mxu0 %v1294
    %v1365 = vpop.f32.mrb[0].mxu0
    %v1366 = vadd.f32 0.0, %v1365
    %v1367 = vpop.f32.mrb[0].mxu0
    %1368 = vmatprep.mubr.f32.mxu0 0.0
    %1369 = vmatmul.mubr.f32.gmra.mrb[0].mxu0 %v1297
    %v1370 = vpop.f32.mrb[0].mxu0
    %v1371 = vadd.f32 0.0, %v1370
    %v1372 = vpop.f32.mrb[0].mxu0
    %1373 = vdwg.mxu0
    %v1374 = vadd.f32 %v1137, %v1366
    %v1375 = vadd.f32 %v1138, %v1371
    %v1376 = vld [vmem:[%s67] sm:$0x1]
    %v1378 = vlaneseq
    %v1379 = vshrl.u32 %v1378, 7
    %v1380 = vsub.s32 0, %v1379
    %v1381 = vrot.slane %v1376, %v1380
    %v1383 = vadd.f32 %v1374, %v1381
    %v1384 = vadd.f32 %v1375, %v1381
    %v1385 = vld [vmem:[%s17] sm:$0x1]
    %v1386 = vld [vmem:[#allocation2] sm:$0x1]
    %v1387 = vld [vmem:[%s15] sm:$0x1]
    %vm1388 = vcmask 16384
    %v1389 = vsel %vm1388, %v1387, -inf
    %1390 = vmax.xlane.f32.xlu0 %v1389
    %v1391 = vpop.xlane.xlu0 %1390
    %v1392 = vsub.f32 %v1387, %v1391
    %v1393 = vmul.f32 %v1392, 1.442695
    %v1394 = vpow.pop %v1393
    %v1395 = vsel %vm1388, %v1394, 0.0
    %1396 = vadd.xlane.f32.xlu0 %v1395
    %v1397 = vpop.xlane.xlu0 %1396
    %v1398 = vrcp.pop %v1397
    %v1399 = vmul.f32 %v1394, %v1398
    %v1401 = vlaneseq
    %v1402 = vshrl.u32 %v1401, 7
    %v1403 = vsub.s32 0, %v1402
    %v1404 = vrot.slane %v1385, %v1403
    %v1406 = vmul.f32 %v1383, %v1404
    %v1407 = vsel %vm250, %v1406, 0.0
    %1408 = vadd.xlane.f32.xlu0 %v1407
    %v1409 = vpop.xlane.xlu0 %1408
    %v1411 = vlaneseq
    %v1412 = vshrl.u32 %v1411, 7
    %v1413 = vsub.s32 0, %v1412
    %v1414 = vrot.slane %v1386, %v1413
    %v1416 = vadd.f32 %v1409, %v1414
    %vm1417 = vcmask 7168
    %v1418 = vsel %vm1417, %v1416, -inf
    %v1419 = vrot.slane %v1418, 4
    %v1420 = vmax.f32 %v1418, %v1419
    %v1421 = vrot.slane %v1420, 2
    %v1422 = vmax.f32 %v1420, %v1421
    %v1423 = vrot.slane %v1422, 1
    %v1424 = vmax.f32 %v1422, %v1423
    %v1425 = vsub.f32 %v1416, %v1424
    %v1426 = vmul.f32 %v1425, 1.442695
    %v1427 = vpow.pop %v1426
    %v1428 = vsel %vm1417, %v1427, 0.0
    %v1429 = vrot.slane %v1428, 4
    %v1430 = vadd.f32 %v1428, %v1429
    %v1431 = vrot.slane %v1430, 2
    %v1432 = vadd.f32 %v1430, %v1431
    %v1433 = vrot.slane %v1432, 1
    %v1434 = vadd.f32 %v1432, %v1433
    %v1435 = vrcp.pop %v1434
    %v1436 = vmul.f32 %v1427, %v1435
    %1438 = vset.pattern.permute.xlu0 0
    %1439 = vperm.xlu0 %1438, %v1436
    %v1440 = vpop.permute.xlu0 %1439
    %v1442 = vmul.f32 %v1440, %v1383
    %v1443 = vsel %vm250, %v1442, 0.0
    %v1444 = vrot.slane %v1443, 4
    %v1445 = vadd.f32 %v1443, %v1444
    %v1446 = vrot.slane %v1445, 2
    %v1447 = vadd.f32 %v1445, %v1446
    %v1448 = vrot.slane %v1447, 1
    %v1449 = vadd.f32 %v1447, %v1448
    %v1450 = vsel %vm250, %v1383, -inf
    %v1451 = vrot.slane %v1450, 4
    %v1452 = vmax.f32 %v1450, %v1451
    %v1453 = vrot.slane %v1452, 2
    %v1454 = vmax.f32 %v1452, %v1453
    %v1455 = vrot.slane %v1454, 1
    %v1456 = vmax.f32 %v1454, %v1455
    %v1457 = vsel %vm250, %v1383, 0.0
    %v1458 = vrot.slane %v1457, 4
    %v1459 = vadd.f32 %v1457, %v1458
    %v1460 = vrot.slane %v1459, 2
    %v1461 = vadd.f32 %v1459, %v1460
    %v1462 = vrot.slane %v1461, 1
    %v1463 = vadd.f32 %v1461, %v1462
    %v1464 = vrcp.pop 8.0
    %v1465 = vmul.f32 %v1463, %v1464
    %1467 = vset.pattern.permute.xlu0 0
    %1468 = vperm.xlu0 %1467, %v1399
    %v1469 = vpop.permute.xlu0 %1468
    %v1471 = vlaneseq
    %v1472 = vshrl.u32 %v1471, 7
    %v1473 = vsub.s32 0, %v1472
    %v1474 = vrot.slane %v1469, %v1473
    %v1475 = vmul.f32 %v1474, %v1449
    %1476 = vset.pattern.permute.xlu0 1
    %1477 = vperm.xlu0 %1476, %v1399
    %v1478 = vpop.permute.xlu0 %1477
    %v1480 = vlaneseq
    %v1481 = vshrl.u32 %v1480, 7
    %v1482 = vsub.s32 0, %v1481
    %v1483 = vrot.slane %v1478, %v1482
    %v1484 = vmul.f32 %v1483, %v1456
    %v1485 = vadd.f32 %v1475, %v1484
    %1486 = vset.pattern.permute.xlu0 2
    %1487 = vperm.xlu0 %1486, %v1399
    %v1488 = vpop.permute.xlu0 %1487
    %v1490 = vlaneseq
    %v1491 = vshrl.u32 %v1490, 7
    %v1492 = vsub.s32 0, %v1491
    %v1493 = vrot.slane %v1488, %v1492
    %v1494 = vmul.f32 %v1493, %v1465
    %v1495 = vadd.f32 %v1485, %v1494
    %v1496 = vmul.f32 %v1384, %v1404
    %v1497 = vsel %vm250, %v1496, 0.0
    %1498 = vadd.xlane.f32.xlu0 %v1497
    %v1499 = vpop.xlane.xlu0 %1498
    %v1500 = vadd.f32 %v1499, %v1414
    %v1501 = vsel %vm1417, %v1500, -inf
    %v1502 = vrot.slane %v1501, 4
    %v1503 = vmax.f32 %v1501, %v1502
    %v1504 = vrot.slane %v1503, 2
    %v1505 = vmax.f32 %v1503, %v1504
    %v1506 = vrot.slane %v1505, 1
    %v1507 = vmax.f32 %v1505, %v1506
    %v1508 = vsub.f32 %v1500, %v1507
    %v1509 = vmul.f32 %v1508, 1.442695
    %v1510 = vpow.pop %v1509
    %v1511 = vsel %vm1417, %v1510, 0.0
    %v1512 = vrot.slane %v1511, 4
    %v1513 = vadd.f32 %v1511, %v1512
    %v1514 = vrot.slane %v1513, 2
    %v1515 = vadd.f32 %v1513, %v1514
    %v1516 = vrot.slane %v1515, 1
    %v1517 = vadd.f32 %v1515, %v1516
    %v1518 = vrcp.pop %v1517
    %v1519 = vmul.f32 %v1510, %v1518
    %1521 = vset.pattern.permute.xlu0 0
    %1522 = vperm.xlu0 %1521, %v1519
    %v1523 = vpop.permute.xlu0 %1522
    %v1525 = vmul.f32 %v1523, %v1384
    %v1526 = vsel %vm250, %v1525, 0.0
    %v1527 = vrot.slane %v1526, 4
    %v1528 = vadd.f32 %v1526, %v1527
    %v1529 = vrot.slane %v1528, 2
    %v1530 = vadd.f32 %v1528, %v1529
    %v1531 = vrot.slane %v1530, 1
    %v1532 = vadd.f32 %v1530, %v1531
    %v1533 = vsel %vm250, %v1384, -inf
    %v1534 = vrot.slane %v1533, 4
    %v1535 = vmax.f32 %v1533, %v1534
    %v1536 = vrot.slane %v1535, 2
    %v1537 = vmax.f32 %v1535, %v1536
    %v1538 = vrot.slane %v1537, 1
    %v1539 = vmax.f32 %v1537, %v1538
    %v1540 = vsel %vm250, %v1384, 0.0
    %v1541 = vrot.slane %v1540, 4
    %v1542 = vadd.f32 %v1540, %v1541
    %v1543 = vrot.slane %v1542, 2
    %v1544 = vadd.f32 %v1542, %v1543
    %v1545 = vrot.slane %v1544, 1
    %v1546 = vadd.f32 %v1544, %v1545
    %v1547 = vmul.f32 %v1546, %v1464
    %v1548 = vmul.f32 %v1474, %v1532
    %v1549 = vmul.f32 %v1483, %v1539
    %v1550 = vadd.f32 %v1548, %v1549
    %v1551 = vmul.f32 %v1493, %v1547
    %v1552 = vadd.f32 %v1550, %v1551
    %vm1553 = vcmask 1040384
    %v1554 = vsel %vm1553, %v1495, %v1552
    %v1555 = vld [vmem:[%s21] sm:$0x1]
    %v1556 = vld [vmem:[%s23] sm:$0x1]
    %vm1557 = vcmask 254976
    %v1558 = vsel %vm1557, %v1554, 0.0
    %1559 = vadd.xlane.f32.xlu0 %v1558
    %v1560 = vpop.xlane.xlu0 %1559
    %v1561 = vmul.f32 %v1560, %v257
    %v1562 = vsub.f32 %v1554, %v1561
    %v1563 = vmul.f32 %v1562, %v1562
    %v1564 = vsel %vm1557, %v1563, 0.0
    %1565 = vadd.xlane.f32.xlu0 %v1564
    %v1566 = vpop.xlane.xlu0 %1565
    %v1567 = vmul.f32 %v1566, %v257
    %v1568 = vadd.f32 %v1567, 1e-05
    %v1569 = vrsqrt.pop %v1568
    %v1570 = vmul.f32 %v1562, %v1569
    %v1572 = vlaneseq
    %v1573 = vshrl.u32 %v1572, 7
    %v1574 = vsub.s32 0, %v1573
    %v1575 = vrot.slane %v1555, %v1574
    %v1577 = vmul.f32 %v1570, %v1575
    %v1579 = vlaneseq
    %v1580 = vshrl.u32 %v1579, 7
    %v1581 = vsub.s32 0, %v1580
    %v1582 = vrot.slane %v1556, %v1581
    %v1584 = vadd.f32 %v1577, %v1582
    %v1585 = vld [vmem:[%s25] sm:$0xff]
    %v1586 = vld [vmem:[%s25 + $0x8] sm:$0xff]
    %v1587 = vld [vmem:[%s25 + $0x10] sm:$0xff]
    %v1588 = vld [vmem:[%s25 + $0x18] sm:$0xff]
    %v1589 = vld [vmem:[%s27] sm:$0x1]
    %v1591 = vlaneseq
    %v1592 = vshrl.u32 %v1591, 7
    %v1593 = vsub.s32 0, %v1592
    %v1594 = vrot.slane %v1589, %v1593
    %v1597 = vsel %vm250, %v1584, 0
    %1599 = vmatprep.subr.mxu0 0.0
    %1600 = vmatpush1.msra.mxu0 %v1585
    %1601 = vmatprep.subr.mxu0 0.0
    %1602 = vmatpush1.msra.mxu0 %v1586
    %1603 = vmatprep.subr.mxu0 0.0
    %1604 = vmatpush1.msra.mxu0 %v1587
    %1605 = vmatprep.subr.mxu0 0.0
    %1606 = vmatpush1.msra.mxu0 %v1588
    %1607 = vmatprep.subr.mxu0 0.0
    %1608 = vmatpush1.msra.mxu0 0.0
    %1609 = vmatprep.subr.mxu0 0.0
    %1610 = vmatpush1.msra.mxu0 0.0
    %1611 = vmatprep.subr.mxu0 0.0
    %1612 = vmatpush1.msra.mxu0 0.0
    %1613 = vmatprep.subr.mxu0 0.0
    %1614 = vmatpush1.msra.mxu0 0.0
    %1615 = vmatprep.subr.mxu0 0.0
    %1616 = vmatpush1.msra.mxu0 0.0
    %1617 = vmatprep.subr.mxu0 0.0
    %1618 = vmatpush1.msra.mxu0 0.0
    %1619 = vmatprep.subr.mxu0 0.0
    %1620 = vmatpush1.msra.mxu0 0.0
    %1621 = vmatprep.subr.mxu0 0.0
    %1622 = vmatpush1.msra.mxu0 0.0
    %1623 = vmatprep.subr.mxu0 0.0
    %1624 = vmatpush1.msra.mxu0 0.0
    %1625 = vmatprep.subr.mxu0 0.0
    %1626 = vmatpush1.msra.mxu0 0.0
    %1627 = vmatprep.subr.mxu0 0.0
    %1628 = vmatpush1.msra.mxu0 0.0
    %1629 = vmatprep.subr.mxu0 0.0
    %1630 = vmatpush1.msra.mxu0 0.0
    %1631 = vmatprep.subr.mxu0 0.0
    %1632 = vmatpush1.msra.mxu0 0.0
    %1633 = vmatprep.subr.mxu0 0.0
    %1634 = vmatpush1.msra.mxu0 0.0
    %1635 = vmatprep.subr.mxu0 0.0
    %1636 = vmatpush1.msra.mxu0 0.0
    %1637 = vmatprep.subr.mxu0 0.0
    %1638 = vmatpush1.msra.mxu0 0.0
    %1639 = vmatprep.subr.mxu0 0.0
    %1640 = vmatpush1.msra.mxu0 0.0
    %1641 = vmatprep.subr.mxu0 0.0
    %1642 = vmatpush1.msra.mxu0 0.0
    %1643 = vmatprep.subr.mxu0 0.0
    %1644 = vmatpush1.msra.mxu0 0.0
    %1645 = vmatprep.subr.mxu0 0.0
    %1646 = vmatpush1.msra.mxu0 0.0
    %1647 = vmatprep.subr.mxu0 0.0
    %1648 = vmatpush1.msra.mxu0 0.0
    %1649 = vmatprep.subr.mxu0 0.0
    %1650 = vmatpush1.msra.mxu0 0.0
    %1651 = vmatprep.subr.mxu0 0.0
    %1652 = vmatpush1.msra.mxu0 0.0
    %1653 = vmatprep.subr.mxu0 0.0
    %1654 = vmatpush1.msra.mxu0 0.0
    %1655 = vmatprep.subr.mxu0 0.0
    %1656 = vmatpush1.msra.mxu0 0.0
    %1657 = vmatprep.subr.mxu0 0.0
    %1658 = vmatpush1.msra.mxu0 0.0
    %1659 = vmatprep.subr.mxu0 0.0
    %1660 = vmatpush1.msra.mxu0 0.0
    %1661 = vmatprep.subr.mxu0 0.0
    %1662 = vmatpush1.msra.mxu0 0.0
    %1663 = vmatprep.mubr.f32.mxu0 0.0
    %1664 = vmatmul.mubr.f32.gmra.mrb[0].mxu0 %v1597
    %v1665 = vpop.f32.mrb[0].mxu0
    %v1666 = vadd.f32 %v1594, %v1665
    %v1667 = vpop.f32.mrb[0].mxu0
    %1668 = vdwg.mxu0
    %v1669 = vmul.f32 %v1666, 0.5
    %v1670 = vmul.f32 %v1666, 0.70710677
    %v1671 = verf.f32.pop %v1670
    %v1672 = vadd.f32 %v1671, 1.0
    %v1673 = vmul.f32 %v1669, %v1672
    %v1674 = vld [vmem:[%s29] sm:$0xff]
    %v1675 = vld [vmem:[%s29 + $0x8] sm:$0xff]
    %v1676 = vld [vmem:[%s29 + $0x10] sm:$0xff]
    %v1677 = vld [vmem:[%s29 + $0x18] sm:$0xff]
    %v1678 = vld [vmem:[%s29 + $0x20] sm:$0xff]
    %v1679 = vld [vmem:[%s29 + $0x28] sm:$0xff]
    %v1680 = vld [vmem:[%s29 + $0x30] sm:$0xff]
    %v1681 = vld [vmem:[%s29 + $0x38] sm:$0xff]
    %v1682 = vld [vmem:[%s31] sm:$0x1]
    %v1684 = vlaneseq
    %v1685 = vshrl.u32 %v1684, 7
    %v1686 = vsub.s32 0, %v1685
    %v1687 = vrot.slane %v1682, %v1686
    %v1690 = vsel %vm725, %v1673, 0
    %1692 = vmatprep.subr.mxu0 0.0
    %1693 = vmatpush1.msra.mxu0 %v1674
    %1694 = vmatprep.subr.mxu0 0.0
    %1695 = vmatpush1.msra.mxu0 %v1675
    %1696 = vmatprep.subr.mxu0 0.0
    %1697 = vmatpush1.msra.mxu0 %v1676
    %1698 = vmatprep.subr.mxu0 0.0
    %1699 = vmatpush1.msra.mxu0 %v1677
    %1700 = vmatprep.subr.mxu0 0.0
    %1701 = vmatpush1.msra.mxu0 %v1678
    %1702 = vmatprep.subr.mxu0 0.0
    %1703 = vmatpush1.msra.mxu0 %v1679
    %1704 = vmatprep.subr.mxu0 0.0
    %1705 = vmatpush1.msra.mxu0 %v1680
    %1706 = vmatprep.subr.mxu0 0.0
    %1707 = vmatpush1.msra.mxu0 %v1681
    %1708 = vmatprep.subr.mxu0 0.0
    %1709 = vmatpush1.msra.mxu0 0.0
    %1710 = vmatprep.subr.mxu0 0.0
    %1711 = vmatpush1.msra.mxu0 0.0
    %1712 = vmatprep.subr.mxu0 0.0
    %1713 = vmatpush1.msra.mxu0 0.0
    %1714 = vmatprep.subr.mxu0 0.0
    %1715 = vmatpush1.msra.mxu0 0.0
    %1716 = vmatprep.subr.mxu0 0.0
    %1717 = vmatpush1.msra.mxu0 0.0
    %1718 = vmatprep.subr.mxu0 0.0
    %1719 = vmatpush1.msra.mxu0 0.0
    %1720 = vmatprep.subr.mxu0 0.0
    %1721 = vmatpush1.msra.mxu0 0.0
    %1722 = vmatprep.subr.mxu0 0.0
    %1723 = vmatpush1.msra.mxu0 0.0
    %1724 = vmatprep.subr.mxu0 0.0
    %1725 = vmatpush1.msra.mxu0 0.0
    %1726 = vmatprep.subr.mxu0 0.0
    %1727 = vmatpush1.msra.mxu0 0.0
    %1728 = vmatprep.subr.mxu0 0.0
    %1729 = vmatpush1.msra.mxu0 0.0
    %1730 = vmatprep.subr.mxu0 0.0
    %1731 = vmatpush1.msra.mxu0 0.0
    %1732 = vmatprep.subr.mxu0 0.0
    %1733 = vmatpush1.msra.mxu0 0.0
    %1734 = vmatprep.subr.mxu0 0.0
    %1735 = vmatpush1.msra.mxu0 0.0
    %1736 = vmatprep.subr.mxu0 0.0
    %1737 = vmatpush1.msra.mxu0 0.0
    %1738 = vmatprep.subr.mxu0 0.0
    %1739 = vmatpush1.msra.mxu0 0.0
    %1740 = vmatprep.subr.mxu0 0.0
    %1741 = vmatpush1.msra.mxu0 0.0
    %1742 = vmatprep.subr.mxu0 0.0
    %1743 = vmatpush1.msra.mxu0 0.0
    %1744 = vmatprep.subr.mxu0 0.0
    %1745 = vmatpush1.msra.mxu0 0.0
    %1746 = vmatprep.subr.mxu0 0.0
    %1747 = vmatpush1.msra.mxu0 0.0
    %1748 = vmatprep.subr.mxu0 0.0
    %1749 = vmatpush1.msra.mxu0 0.0
    %1750 = vmatprep.subr.mxu0 0.0
    %1751 = vmatpush1.msra.mxu0 0.0
    %1752 = vmatprep.subr.mxu0 0.0
    %1753 = vmatpush1.msra.mxu0 0.0
    %1754 = vmatprep.subr.mxu0 0.0
    %1755 = vmatpush1.msra.mxu0 0.0
    %1756 = vmatprep.mubr.f32.mxu0 0.0
    %1757 = vmatmul.mubr.f32.gmra.mrb[0].mxu0 %v1690
    %v1758 = vpop.f32.mrb[0].mxu0
    %v1759 = vadd.f32 %v1687, %v1758
    %v1760 = vpop.f32.mrb[0].mxu0
    %1761 = vdwg.mxu0
    %v1762 = vld [vmem:[%s33] sm:$0xff]
    %v1763 = vld [vmem:[%s33 + $0x8] sm:$0xff]
    %v1764 = vld [vmem:[%s33 + $0x10] sm:$0xff]
    %v1765 = vld [vmem:[%s33 + $0x18] sm:$0xff]
    %v1766 = vld [vmem:[%s35] sm:$0x1]
    %v1768 = vlaneseq
    %v1769 = vshrl.u32 %v1768, 7
    %v1770 = vsub.s32 0, %v1769
    %v1771 = vrot.slane %v1766, %v1770
    %v1774 = vsel %vm250, %v1759, 0
    %1776 = vmatprep.subr.mxu0 0.0
    %1777 = vmatpush1.msra.mxu0 %v1762
    %1778 = vmatprep.subr.mxu0 0.0
    %1779 = vmatpush1.msra.mxu0 %v1763
    %1780 = vmatprep.subr.mxu0 0.0
    %1781 = vmatpush1.msra.mxu0 %v1764
    %1782 = vmatprep.subr.mxu0 0.0
    %1783 = vmatpush1.msra.mxu0 %v1765
    %1784 = vmatprep.subr.mxu0 0.0
    %1785 = vmatpush1.msra.mxu0 0.0
    %1786 = vmatprep.subr.mxu0 0.0
    %1787 = vmatpush1.msra.mxu0 0.0
    %1788 = vmatprep.subr.mxu0 0.0
    %1789 = vmatpush1.msra.mxu0 0.0
    %1790 = vmatprep.subr.mxu0 0.0
    %1791 = vmatpush1.msra.mxu0 0.0
    %1792 = vmatprep.subr.mxu0 0.0
    %1793 = vmatpush1.msra.mxu0 0.0
    %1794 = vmatprep.subr.mxu0 0.0
    %1795 = vmatpush1.msra.mxu0 0.0
    %1796 = vmatprep.subr.mxu0 0.0
    %1797 = vmatpush1.msra.mxu0 0.0
    %1798 = vmatprep.subr.mxu0 0.0
    %1799 = vmatpush1.msra.mxu0 0.0
    %1800 = vmatprep.subr.mxu0 0.0
    %1801 = vmatpush1.msra.mxu0 0.0
    %1802 = vmatprep.subr.mxu0 0.0
    %1803 = vmatpush1.msra.mxu0 0.0
    %1804 = vmatprep.subr.mxu0 0.0
    %1805 = vmatpush1.msra.mxu0 0.0
    %1806 = vmatprep.subr.mxu0 0.0
    %1807 = vmatpush1.msra.mxu0 0.0
    %1808 = vmatprep.subr.mxu0 0.0
    %1809 = vmatpush1.msra.mxu0 0.0
    %1810 = vmatprep.subr.mxu0 0.0
    %1811 = vmatpush1.msra.mxu0 0.0
    %1812 = vmatprep.subr.mxu0 0.0
    %1813 = vmatpush1.msra.mxu0 0.0
    %1814 = vmatprep.subr.mxu0 0.0
    %1815 = vmatpush1.msra.mxu0 0.0
    %1816 = vmatprep.subr.mxu0 0.0
    %1817 = vmatpush1.msra.mxu0 0.0
    %1818 = vmatprep.subr.mxu0 0.0
    %1819 = vmatpush1.msra.mxu0 0.0
    %1820 = vmatprep.subr.mxu0 0.0
    %1821 = vmatpush1.msra.mxu0 0.0
    %1822 = vmatprep.subr.mxu0 0.0
    %1823 = vmatpush1.msra.mxu0 0.0
    %1824 = vmatprep.subr.mxu0 0.0
    %1825 = vmatpush1.msra.mxu0 0.0
    %1826 = vmatprep.subr.mxu0 0.0
    %1827 = vmatpush1.msra.mxu0 0.0
    %1828 = vmatprep.subr.mxu0 0.0
    %1829 = vmatpush1.msra.mxu0 0.0
    %1830 = vmatprep.subr.mxu0 0.0
    %1831 = vmatpush1.msra.mxu0 0.0
    %1832 = vmatprep.subr.mxu0 0.0
    %1833 = vmatpush1.msra.mxu0 0.0
    %1834 = vmatprep.subr.mxu0 0.0
    %1835 = vmatpush1.msra.mxu0 0.0
    %1836 = vmatprep.subr.mxu0 0.0
    %1837 = vmatpush1.msra.mxu0 0.0
    %1838 = vmatprep.subr.mxu0 0.0
    %1839 = vmatpush1.msra.mxu0 0.0
    %1840 = vmatprep.mubr.f32.mxu0 0.0
    %1841 = vmatmul.mubr.f32.gmra.mrb[0].mxu0 %v1774
    %v1842 = vpop.f32.mrb[0].mxu0
    %v1843 = vadd.f32 %v1771, %v1842
    %v1844 = vpop.f32.mrb[0].mxu0
    %1845 = vdwg.mxu0
    %1846 = vst [vmem:[#allocation3] sm:$0x3] %v1843
    // Predicated region
    $region138: #{advanced_transformer_pallas.1} parent=1 // pred_check
      _
    $region139: #{advanced_transformer_pallas.1} parent=1 // pred_check_branch
      %1848 = sbr.rel (0) target = $region141
    $region140: #{advanced_transformer_pallas.1} parent=1 // pred_region
      %s1850 = ssub.s32 32, 32
      %1851 = vsyncadd [#allocation4], %s1850
      %s1853 = sshll.u32 [#allocation3], 4
      %s1854 = int_to_ptr.vmem [resolvable:$true] %s1853
      %1856 = dma.vmem_to_hbm [thread:$0]  %s1854, 32, %s69, [#allocation4]
    $region141: #{advanced_transformer_pallas.1} parent=1 // pred_fallthru
      _
    // Predicated region
    $region142: #{advanced_transformer_pallas.1} parent=1 // pred_check
      _
    $region143: #{advanced_transformer_pallas.1} parent=1 // pred_check_branch
      %1858 = sbr.rel (0) target = $region145
    $region144: #{advanced_transformer_pallas.1} parent=1 // pred_region
      %1859 = dma.done [#allocation4], 32
    $region145: #{advanced_transformer_pallas.1} parent=1 // pred_fallthru
      _
    %1860 = vsyncpa [#allocation4], 1

</llo_original>
